<compile_context>
chip_gen: v7x
topology: tpu7x:2x2x1
jax: 0.10.0
libtpu: 0.0.40
codegen_flags: <defaults>
</compile_context>

<pallas_src>
import functools
import math

import jax
import jax.numpy as jnp
from jax.experimental import pallas as pl
from jax.experimental.pallas import tpu as pltpu

LATENT_DIM = 4
CHANNELS = [21, 16, 8, LATENT_DIM, 8, 16, 21]  # conv chain (encoder + decoder)


def _round8(c):
    return -(-c // 8) * 8


def _autoencoder_kernel(x_ref, *refs, seq_len):
    # refs = (w1, b1, w2, b2, ..., w6, b6, out_ref)
    out_ref = refs[-1]
    params = refs[:-1]
    _, R = x_ref.shape
    L = seq_len

    # Position-in-sequence masks, built once per grid step from a lane iota
    # (VPU filler under an MXU-bound kernel; no extra input streams).
    lpos = jax.lax.broadcasted_iota(jnp.int32, (1, R), 1) % L
    mask_m = (lpos != 0).astype(jnp.float32)         # zero l == 0 for the l-1 tap
    mask_p = (lpos != (L - 1)).astype(jnp.float32)   # zero l == L-1 for the l+1 tap

    h = x_ref[...].astype(jnp.float32)               # (Cin_pad, R), lane-dense
    n_layers = len(params) // 2
    for i in range(n_layers):                        # static unroll: 6 conv layers
        w = params[2 * i][...]                       # (Cout_pad, 3*Cin_pad), packed taps
        b = params[2 * i + 1][...]                   # (Cout_pad, 1) float32

        # Conv1d(k=3, pad=1): neighbours are XLU lane rotations; boundary and
        # cross-sequence leakage is killed by the 0/1 masks.
        hm = pltpu.roll(h, shift=1, axis=1) * mask_m        # h[l-1]
        hp = pltpu.roll(h, shift=R - 1, axis=1) * mask_p    # h[l+1] (shift mod R == -1)

        # Fused 3-tap conv: one (Cout,3*Cin) @ (3*Cin,R) MXU matmul, big R on
        # the lane/N axis, f32 accumulation. Cin_pad is a multiple of 8 so the
        # sublane concat is aligned.
        h3 = jnp.concatenate([hm, h, hp], axis=0).astype(w.dtype)
        y = jnp.dot(w, h3, preferred_element_type=jnp.float32) + b

        if i < n_layers - 1:
            h = jnp.maximum(y, 0.0)                  # ReLU (layers 0..4)
        else:
            h = jax.nn.sigmoid(y)                    # Sigmoid (final layer)

    out_ref[...] = h.astype(out_ref.dtype)


def cnn1d_autoencoder(x, params, *, block_b=None, compute_dtype=jnp.float32):
    """x: (B, L, 21) float32; params: list of (w (3,Cin,Cout), b (1,Cout))."""
    B, L, C = x.shape
    c_in = params[0][0].shape[1]
    c_out = params[-1][0].shape[2]
    assert C == c_in
    c_in_pad, c_out_pad = _round8(c_in), _round8(c_out)

    # block_b must make R = block_b*L a multiple of 128 lanes.
    lane_mult = 128 // math.gcd(L, 128)

    if block_b is None:
        # Working set ~2 KiB per flattened column (f32 activations + tap-concat
        # operand + double-buffered I/O tiles); a 16 MiB budget keeps the tile
        # safely under every generation's scoped VMEM (v5e 16 MiB default,
        # v7x 64 MiB physical). >=2 grid steps feed both v7x TensorCores.
        vmem_budget = 16 * 1024 * 1024
        bytes_per_col = 2048
        cap = max(lane_mult, (vmem_budget // bytes_per_col) // L)
        block_b = max(1, min(cap, -(-B // 2)))
    block_b = lane_mult * (-(-block_b // lane_mult))

    n_blocks = -(-B // block_b)
    if n_blocks > 1 and n_blocks % 2:
        n_blocks += 1                     # even step count: balanced v7x megacore split
    b_padded = n_blocks * block_b
    R = block_b * L

    # Channels-first, flattened, channel-padded input slab: (c_in_pad, b_padded*L).
    xp = jnp.pad(x, ((0, b_padded - B), (0, 0), (0, 0))) if b_padded != B else x
    x_cf = jnp.transpose(xp, (2, 0, 1)).reshape(c_in, b_padded * L)
    x_cf = jnp.pad(x_cf, ((0, c_in_pad - c_in), (0, 0)))

    # Pack each Conv1d's 3 taps into one (Cout_pad, 3*Cin_pad) matrix, columns
    # ordered [l-1 | l | l+1] to match the kernel concat; padded rows/cols are 0.
    flat = []
    in_specs = [pl.BlockSpec((c_in_pad, R), lambda i: (0, i))]
    n_layers = len(params)
    for li, (w, bias) in enumerate(params):          # w (3,Cin,Cout), bias (1,Cout)
        _, cin, cout = w.shape
        cinp, coutp = _round8(cin), _round8(cout)
        wp = jnp.zeros((3, cinp, coutp), jnp.float32).at[:, :cin, :cout].set(w)
        wp = wp.reshape(3 * cinp, coutp).T           # (Cout_pad, 3*Cin_pad)
        bp = jnp.zeros((coutp, 1), jnp.float32).at[:cout, 0].set(bias.reshape(-1))
        # Keep the final (16->21) layer's operands f32 even on the bf16 path.
        w_dtype = compute_dtype if li < n_layers - 1 else jnp.float32
        flat += [wp.astype(w_dtype), bp]
        in_specs += [pl.BlockSpec(wp.shape, lambda i: (0, 0)),
                     pl.BlockSpec(bp.shape, lambda i: (0, 0))]

    out_cf = pl.pallas_call(
        functools.partial(_autoencoder_kernel, seq_len=L),
        out_shape=jax.ShapeDtypeStruct((c_out_pad, b_padded * L), jnp.float32),
        grid=(n_blocks,),
        in_specs=in_specs,
        out_specs=pl.BlockSpec((c_out_pad, R), lambda i: (0, i)),
        compiler_params=pltpu.CompilerParams(
            dimension_semantics=("parallel",),
            vmem_limit_bytes=32 * 1024 * 1024),
    )(x_cf, *flat)

    out = jnp.transpose(out_cf[:c_out].reshape(c_out, b_padded, L), (1, 2, 0))
    return out[:B] if b_padded != B else out


def init_params(key):
    """Deterministic synthetic weights with the Conv1d shapes of the module."""
    params = []
    for i in range(len(CHANNELS) - 1):
        cin, cout = CHANNELS[i], CHANNELS[i + 1]
        key, kw, kb = jax.random.split(key, 3)
        scale = 1.0 / jnp.sqrt(jnp.float32(cin * 3))
        # torch weight is (Cout, Cin, 3); we store it tap-major as (3, Cin, Cout)
        w = jax.random.uniform(kw, (3, cin, cout), jnp.float32, -scale, scale)
        b = jax.random.uniform(kb, (1, cout), jnp.float32, -scale, scale)
        params.append((w, b))
    return params


def ref_forward(x, params):
    """Pure-JAX reference (same math as torch Conv1d k=3 pad=1 chain)."""
    h = x.astype(jnp.float32)
    n = len(params)
    for i, (w, b) in enumerate(params):
        hp = jnp.pad(h, ((0, 0), (1, 1), (0, 0)))
        y = (jnp.einsum('blc,cd->bld', hp[:, :-2, :], w[0])
             + jnp.einsum('blc,cd->bld', hp[:, 1:-1, :], w[1])
             + jnp.einsum('blc,cd->bld', hp[:, 2:, :], w[2])
             + b.reshape(1, 1, -1))
        if i < n - 1:
            h = jnp.maximum(y, 0.0)
        else:
            h = jax.nn.sigmoid(y)
    return h


if __name__ == "__main__":
    key = jax.random.PRNGKey(0)
    key, kx = jax.random.split(key)

    # B=50 exercises the batch-padding path (block_b -> 32, 2 grid steps).
    B, L, C = 50, 16, 21
    x = jax.random.normal(kx, (B, L, C), jnp.float32)
    params = init_params(key)

    ref = ref_forward(x, params)

    # f32 compute path (exact Conv1d math, f32 accumulation).
    out = jax.block_until_ready(cnn1d_autoencoder(x, params))
    assert out.shape == (B, L, C)
    err = float(jnp.max(jnp.abs(out - ref)))
    assert jnp.allclose(out, ref, rtol=1e-4, atol=1e-4), f"f32 max abs err {err}"

    # bf16 matmul operands, f32 accumulation (last layer stays f32).
    out_bf16 = jax.block_until_ready(
        cnn1d_autoencoder(x, params, compute_dtype=jnp.bfloat16))
    err_bf16 = float(jnp.max(jnp.abs(out_bf16 - ref)))
    assert jnp.allclose(out_bf16, ref, atol=5e-2), f"bf16 max abs err {err_bf16}"

    print("KERNEL_OK")
</pallas_src>

<mosaic_0001>
module attributes {stable_mosaic.version = 11 : i64} {
  func.func @_autoencoder_kernel(%arg0: i32, %arg1: memref<24x512xf32, #tpu.memory_space<vmem>>, %arg2: memref<16x72xf32, #tpu.memory_space<vmem>>, %arg3: memref<16x1xf32, #tpu.memory_space<vmem>>, %arg4: memref<8x48xf32, #tpu.memory_space<vmem>>, %arg5: memref<8x1xf32, #tpu.memory_space<vmem>>, %arg6: memref<8x24xf32, #tpu.memory_space<vmem>>, %arg7: memref<8x1xf32, #tpu.memory_space<vmem>>, %arg8: memref<8x24xf32, #tpu.memory_space<vmem>>, %arg9: memref<8x1xf32, #tpu.memory_space<vmem>>, %arg10: memref<16x24xf32, #tpu.memory_space<vmem>>, %arg11: memref<16x1xf32, #tpu.memory_space<vmem>>, %arg12: memref<24x48xf32, #tpu.memory_space<vmem>>, %arg13: memref<24x1xf32, #tpu.memory_space<vmem>>, %arg14: memref<24x512xf32, #tpu.memory_space<vmem>>) attributes {dimension_semantics = [#tpu.dimension_semantics<parallel>], iteration_bounds = array<i64: 2>, scalar_prefetch = 0 : i64, scratch_operands = 0 : i64, tpu.core_type = #tpu.core_type<tc>, window_params = [{transform_indices = @transform_0, window_bounds = array<i64: 24, 512>}, {pipeline_mode = #tpu.pipeline_mode<synchronous>, transform_indices = @transform_1, window_bounds = array<i64: 16, 72>}, {pipeline_mode = #tpu.pipeline_mode<synchronous>, transform_indices = @transform_2, window_bounds = array<i64: 16, 1>}, {pipeline_mode = #tpu.pipeline_mode<synchronous>, transform_indices = @transform_3, window_bounds = array<i64: 8, 48>}, {pipeline_mode = #tpu.pipeline_mode<synchronous>, transform_indices = @transform_4, window_bounds = array<i64: 8, 1>}, {pipeline_mode = #tpu.pipeline_mode<synchronous>, transform_indices = @transform_5, window_bounds = array<i64: 8, 24>}, {pipeline_mode = #tpu.pipeline_mode<synchronous>, transform_indices = @transform_6, window_bounds = array<i64: 8, 1>}, {pipeline_mode = #tpu.pipeline_mode<synchronous>, transform_indices = @transform_7, window_bounds = array<i64: 8, 24>}, {pipeline_mode = #tpu.pipeline_mode<synchronous>, transform_indices = @transform_8, window_bounds = array<i64: 8, 1>}, {pipeline_mode = #tpu.pipeline_mode<synchronous>, transform_indices = @transform_9, window_bounds = array<i64: 16, 24>}, {pipeline_mode = #tpu.pipeline_mode<synchronous>, transform_indices = @transform_10, window_bounds = array<i64: 16, 1>}, {pipeline_mode = #tpu.pipeline_mode<synchronous>, transform_indices = @transform_11, window_bounds = array<i64: 24, 48>}, {pipeline_mode = #tpu.pipeline_mode<synchronous>, transform_indices = @transform_12, window_bounds = array<i64: 24, 1>}, {transform_indices = @transform_13, window_bounds = array<i64: 24, 512>}]} {
    %0 = tpu.iota {dimensions = array<i32: 1>} : vector<1x512xi32>
    %c16_i32 = arith.constant 16 : i32
    %c0_i32 = arith.constant 0 : i32
    %1 = arith.cmpi eq, %c16_i32, %c0_i32 : i32
    %c1_i32 = arith.constant 1 : i32
    %2 = arith.select %1, %c1_i32, %c16_i32 : i32
    %3 = vector.broadcast %2 : i32 to vector<1x512xi32>
    %4 = arith.remsi %0, %3 : vector<1x512xi32>
    %c0_i32_0 = arith.constant 0 : i32
    %5 = vector.broadcast %c0_i32_0 : i32 to vector<1x512xi32>
    %6 = arith.cmpi ne, %4, %5 : vector<1x512xi32>
    %c0_i32_1 = arith.constant 0 : i32
    %7 = vector.broadcast %c0_i32_1 : i32 to vector<1x512xi32>
    %8 = arith.cmpi slt, %4, %7 : vector<1x512xi32>
    %c0_i32_2 = arith.constant 0 : i32
    %9 = arith.cmpi slt, %2, %c0_i32_2 : i32
    %10 = vector.broadcast %9 : i1 to vector<1x512xi1>
    %11 = vector.broadcast %10 : vector<1x512xi1> to vector<1x512xi1>
    %12 = arith.xori %8, %11 : vector<1x512xi1>
    %13 = arith.andi %12, %6 : vector<1x512xi1>
    %14 = vector.broadcast %2 : i32 to vector<1x512xi32>
    %15 = arith.addi %4, %14 : vector<1x512xi32>
    %16 = arith.select %13, %15, %4 : vector<1x512xi1>, vector<1x512xi32>
    %c0_i32_3 = arith.constant 0 : i32
    %17 = vector.broadcast %c0_i32_3 : i32 to vector<1x512xi32>
    %18 = arith.cmpi ne, %16, %17 : vector<1x512xi32>
    %19 = arith.extui %18 : vector<1x512xi1> to vector<1x512xi32>
    %20 = arith.sitofp %19 : vector<1x512xi32> to vector<1x512xf32>
    %c15_i32 = arith.constant 15 : i32
    %21 = vector.broadcast %c15_i32 : i32 to vector<1x512xi32>
    %22 = arith.cmpi ne, %16, %21 : vector<1x512xi32>
    %23 = arith.extui %22 : vector<1x512xi1> to vector<1x512xi32>
    %24 = arith.sitofp %23 : vector<1x512xi32> to vector<1x512xf32>
    %c0 = arith.constant 0 : index
    %c0_4 = arith.constant 0 : index
    %25 = vector.load %arg1[%c0, %c0_4] : memref<24x512xf32, #tpu.memory_space<vmem>>, vector<24x512xf32>
    %c0_5 = arith.constant 0 : index
    %c0_6 = arith.constant 0 : index
    %26 = vector.load %arg2[%c0_5, %c0_6] : memref<16x72xf32, #tpu.memory_space<vmem>>, vector<16x72xf32>
    %c0_7 = arith.constant 0 : index
    %c0_8 = arith.constant 0 : index
    %27 = vector.load %arg3[%c0_7, %c0_8] : memref<16x1xf32, #tpu.memory_space<vmem>>, vector<16x1xf32>
    %c1_i32_9 = arith.constant 1 : i32
    %28 = tpu.dynamic_rotate %25 by %c1_i32_9 dim 1 : vector<24x512xf32>, i32 -> vector<24x512xf32>
    %29 = vector.broadcast %20 : vector<1x512xf32> to vector<24x512xf32>
    %30 = arith.mulf %28, %29 : vector<24x512xf32>
    %c511_i32 = arith.constant 511 : i32
    %31 = tpu.dynamic_rotate %25 by %c511_i32 dim 1 : vector<24x512xf32>, i32 -> vector<24x512xf32>
    %32 = vector.broadcast %24 : vector<1x512xf32> to vector<24x512xf32>
    %33 = arith.mulf %31, %32 : vector<24x512xf32>
    %34 = tpu.concatenate %30, %25, %33 in 0 : vector<24x512xf32>, vector<24x512xf32>, vector<24x512xf32> -> vector<72x512xf32>
    %cst = arith.constant dense<0.000000e+00> : vector<16x512xf32>
    %35 = tpu.matmul %26, %34, %cst {dimension_numbers = #tpu.dot_dimension_numbers<[1], [0], [0], [1], [0, 0, 1, 1], [], []>} : vector<16x72xf32>, vector<72x512xf32>, vector<16x512xf32> -> vector<16x512xf32>
    %36 = vector.broadcast %27 : vector<16x1xf32> to vector<16x512xf32>
    %37 = arith.addf %35, %36 : vector<16x512xf32>
    %cst_10 = arith.constant 0.000000e+00 : f32
    %38 = vector.broadcast %cst_10 : f32 to vector<16x512xf32>
    %39 = arith.maximumf %37, %38 : vector<16x512xf32>
    %c0_11 = arith.constant 0 : index
    %c0_12 = arith.constant 0 : index
    %40 = vector.load %arg4[%c0_11, %c0_12] : memref<8x48xf32, #tpu.memory_space<vmem>>, vector<8x48xf32>
    %c0_13 = arith.constant 0 : index
    %c0_14 = arith.constant 0 : index
    %41 = vector.load %arg5[%c0_13, %c0_14] : memref<8x1xf32, #tpu.memory_space<vmem>>, vector<8x1xf32>
    %c1_i32_15 = arith.constant 1 : i32
    %42 = tpu.dynamic_rotate %39 by %c1_i32_15 dim 1 : vector<16x512xf32>, i32 -> vector<16x512xf32>
    %43 = vector.broadcast %20 : vector<1x512xf32> to vector<16x512xf32>
    %44 = arith.mulf %42, %43 : vector<16x512xf32>
    %c511_i32_16 = arith.constant 511 : i32
    %45 = tpu.dynamic_rotate %39 by %c511_i32_16 dim 1 : vector<16x512xf32>, i32 -> vector<16x512xf32>
    %46 = vector.broadcast %24 : vector<1x512xf32> to vector<16x512xf32>
    %47 = arith.mulf %45, %46 : vector<16x512xf32>
    %48 = tpu.concatenate %44, %39, %47 in 0 : vector<16x512xf32>, vector<16x512xf32>, vector<16x512xf32> -> vector<48x512xf32>
    %cst_17 = arith.constant dense<0.000000e+00> : vector<8x512xf32>
    %49 = tpu.matmul %40, %48, %cst_17 {dimension_numbers = #tpu.dot_dimension_numbers<[1], [0], [0], [1], [0, 0, 1, 1], [], []>} : vector<8x48xf32>, vector<48x512xf32>, vector<8x512xf32> -> vector<8x512xf32>
    %50 = vector.broadcast %41 : vector<8x1xf32> to vector<8x512xf32>
    %51 = arith.addf %49, %50 : vector<8x512xf32>
    %cst_18 = arith.constant 0.000000e+00 : f32
    %52 = vector.broadcast %cst_18 : f32 to vector<8x512xf32>
    %53 = arith.maximumf %51, %52 : vector<8x512xf32>
    %c0_19 = arith.constant 0 : index
    %c0_20 = arith.constant 0 : index
    %54 = vector.load %arg6[%c0_19, %c0_20] : memref<8x24xf32, #tpu.memory_space<vmem>>, vector<8x24xf32>
    %c0_21 = arith.constant 0 : index
    %c0_22 = arith.constant 0 : index
    %55 = vector.load %arg7[%c0_21, %c0_22] : memref<8x1xf32, #tpu.memory_space<vmem>>, vector<8x1xf32>
    %c1_i32_23 = arith.constant 1 : i32
    %56 = tpu.dynamic_rotate %53 by %c1_i32_23 dim 1 : vector<8x512xf32>, i32 -> vector<8x512xf32>
    %57 = vector.broadcast %20 : vector<1x512xf32> to vector<8x512xf32>
    %58 = arith.mulf %56, %57 : vector<8x512xf32>
    %c511_i32_24 = arith.constant 511 : i32
    %59 = tpu.dynamic_rotate %53 by %c511_i32_24 dim 1 : vector<8x512xf32>, i32 -> vector<8x512xf32>
    %60 = vector.broadcast %24 : vector<1x512xf32> to vector<8x512xf32>
    %61 = arith.mulf %59, %60 : vector<8x512xf32>
    %62 = tpu.concatenate %58, %53, %61 in 0 : vector<8x512xf32>, vector<8x512xf32>, vector<8x512xf32> -> vector<24x512xf32>
    %cst_25 = arith.constant dense<0.000000e+00> : vector<8x512xf32>
    %63 = tpu.matmul %54, %62, %cst_25 {dimension_numbers = #tpu.dot_dimension_numbers<[1], [0], [0], [1], [0, 0, 1, 1], [], []>} : vector<8x24xf32>, vector<24x512xf32>, vector<8x512xf32> -> vector<8x512xf32>
    %64 = vector.broadcast %55 : vector<8x1xf32> to vector<8x512xf32>
    %65 = arith.addf %63, %64 : vector<8x512xf32>
    %cst_26 = arith.constant 0.000000e+00 : f32
    %66 = vector.broadcast %cst_26 : f32 to vector<8x512xf32>
    %67 = arith.maximumf %65, %66 : vector<8x512xf32>
    %c0_27 = arith.constant 0 : index
    %c0_28 = arith.constant 0 : index
    %68 = vector.load %arg8[%c0_27, %c0_28] : memref<8x24xf32, #tpu.memory_space<vmem>>, vector<8x24xf32>
    %c0_29 = arith.constant 0 : index
    %c0_30 = arith.constant 0 : index
    %69 = vector.load %arg9[%c0_29, %c0_30] : memref<8x1xf32, #tpu.memory_space<vmem>>, vector<8x1xf32>
    %c1_i32_31 = arith.constant 1 : i32
    %70 = tpu.dynamic_rotate %67 by %c1_i32_31 dim 1 : vector<8x512xf32>, i32 -> vector<8x512xf32>
    %71 = vector.broadcast %20 : vector<1x512xf32> to vector<8x512xf32>
    %72 = arith.mulf %70, %71 : vector<8x512xf32>
    %c511_i32_32 = arith.constant 511 : i32
    %73 = tpu.dynamic_rotate %67 by %c511_i32_32 dim 1 : vector<8x512xf32>, i32 -> vector<8x512xf32>
    %74 = vector.broadcast %24 : vector<1x512xf32> to vector<8x512xf32>
    %75 = arith.mulf %73, %74 : vector<8x512xf32>
    %76 = tpu.concatenate %72, %67, %75 in 0 : vector<8x512xf32>, vector<8x512xf32>, vector<8x512xf32> -> vector<24x512xf32>
    %cst_33 = arith.constant dense<0.000000e+00> : vector<8x512xf32>
    %77 = tpu.matmul %68, %76, %cst_33 {dimension_numbers = #tpu.dot_dimension_numbers<[1], [0], [0], [1], [0, 0, 1, 1], [], []>} : vector<8x24xf32>, vector<24x512xf32>, vector<8x512xf32> -> vector<8x512xf32>
    %78 = vector.broadcast %69 : vector<8x1xf32> to vector<8x512xf32>
    %79 = arith.addf %77, %78 : vector<8x512xf32>
    %cst_34 = arith.constant 0.000000e+00 : f32
    %80 = vector.broadcast %cst_34 : f32 to vector<8x512xf32>
    %81 = arith.maximumf %79, %80 : vector<8x512xf32>
    %c0_35 = arith.constant 0 : index
    %c0_36 = arith.constant 0 : index
    %82 = vector.load %arg10[%c0_35, %c0_36] : memref<16x24xf32, #tpu.memory_space<vmem>>, vector<16x24xf32>
    %c0_37 = arith.constant 0 : index
    %c0_38 = arith.constant 0 : index
    %83 = vector.load %arg11[%c0_37, %c0_38] : memref<16x1xf32, #tpu.memory_space<vmem>>, vector<16x1xf32>
    %c1_i32_39 = arith.constant 1 : i32
    %84 = tpu.dynamic_rotate %81 by %c1_i32_39 dim 1 : vector<8x512xf32>, i32 -> vector<8x512xf32>
    %85 = vector.broadcast %20 : vector<1x512xf32> to vector<8x512xf32>
    %86 = arith.mulf %84, %85 : vector<8x512xf32>
    %c511_i32_40 = arith.constant 511 : i32
    %87 = tpu.dynamic_rotate %81 by %c511_i32_40 dim 1 : vector<8x512xf32>, i32 -> vector<8x512xf32>
    %88 = vector.broadcast %24 : vector<1x512xf32> to vector<8x512xf32>
    %89 = arith.mulf %87, %88 : vector<8x512xf32>
    %90 = tpu.concatenate %86, %81, %89 in 0 : vector<8x512xf32>, vector<8x512xf32>, vector<8x512xf32> -> vector<24x512xf32>
    %cst_41 = arith.constant dense<0.000000e+00> : vector<16x512xf32>
    %91 = tpu.matmul %82, %90, %cst_41 {dimension_numbers = #tpu.dot_dimension_numbers<[1], [0], [0], [1], [0, 0, 1, 1], [], []>} : vector<16x24xf32>, vector<24x512xf32>, vector<16x512xf32> -> vector<16x512xf32>
    %92 = vector.broadcast %83 : vector<16x1xf32> to vector<16x512xf32>
    %93 = arith.addf %91, %92 : vector<16x512xf32>
    %cst_42 = arith.constant 0.000000e+00 : f32
    %94 = vector.broadcast %cst_42 : f32 to vector<16x512xf32>
    %95 = arith.maximumf %93, %94 : vector<16x512xf32>
    %c0_43 = arith.constant 0 : index
    %c0_44 = arith.constant 0 : index
    %96 = vector.load %arg12[%c0_43, %c0_44] : memref<24x48xf32, #tpu.memory_space<vmem>>, vector<24x48xf32>
    %c0_45 = arith.constant 0 : index
    %c0_46 = arith.constant 0 : index
    %97 = vector.load %arg13[%c0_45, %c0_46] : memref<24x1xf32, #tpu.memory_space<vmem>>, vector<24x1xf32>
    %c1_i32_47 = arith.constant 1 : i32
    %98 = tpu.dynamic_rotate %95 by %c1_i32_47 dim 1 : vector<16x512xf32>, i32 -> vector<16x512xf32>
    %99 = vector.broadcast %20 : vector<1x512xf32> to vector<16x512xf32>
    %100 = arith.mulf %98, %99 : vector<16x512xf32>
    %c511_i32_48 = arith.constant 511 : i32
    %101 = tpu.dynamic_rotate %95 by %c511_i32_48 dim 1 : vector<16x512xf32>, i32 -> vector<16x512xf32>
    %102 = vector.broadcast %24 : vector<1x512xf32> to vector<16x512xf32>
    %103 = arith.mulf %101, %102 : vector<16x512xf32>
    %104 = tpu.concatenate %100, %95, %103 in 0 : vector<16x512xf32>, vector<16x512xf32>, vector<16x512xf32> -> vector<48x512xf32>
    %cst_49 = arith.constant dense<0.000000e+00> : vector<24x512xf32>
    %105 = tpu.matmul %96, %104, %cst_49 {dimension_numbers = #tpu.dot_dimension_numbers<[1], [0], [0], [1], [0, 0, 1, 1], [], []>} : vector<24x48xf32>, vector<48x512xf32>, vector<24x512xf32> -> vector<24x512xf32>
    %106 = vector.broadcast %97 : vector<24x1xf32> to vector<24x512xf32>
    %107 = arith.addf %105, %106 : vector<24x512xf32>
    %108 = arith.negf %107 : vector<24x512xf32>
    %109 = math.exp %108 : vector<24x512xf32>
    %cst_50 = arith.constant 1.000000e+00 : f32
    %110 = vector.broadcast %cst_50 : f32 to vector<24x512xf32>
    %111 = arith.addf %110, %109 : vector<24x512xf32>
    %112 = arith.divf %110, %111 : vector<24x512xf32>
    %c0_51 = arith.constant 0 : index
    %c0_52 = arith.constant 0 : index
    %113 = vector.load %arg14[%c0_51, %c0_52] : memref<24x512xf32, #tpu.memory_space<vmem>>, vector<24x512xf32>
    tpu.vector_store %arg14[%c0_51, %c0_52], %112 {strides = array<i32>} : memref<24x512xf32, #tpu.memory_space<vmem>>, vector<24x512xf32>,
    return
  }
  func.func @transform_0(%arg0: i32) -> (i32, i32) {
    %c0_i32 = arith.constant 0 : i32
    %c0_i32_0 = arith.constant 0 : i32
    return %c0_i32, %arg0 : i32, i32
  }
  func.func @transform_1(%arg0: i32) -> (i32, i32) {
    %c0_i32 = arith.constant 0 : i32
    %c0_i32_0 = arith.constant 0 : i32
    %c0_i32_1 = arith.constant 0 : i32
    return %c0_i32, %c0_i32_0 : i32, i32
  }
  func.func @transform_2(%arg0: i32) -> (i32, i32) {
    %c0_i32 = arith.constant 0 : i32
    %c0_i32_0 = arith.constant 0 : i32
    %c0_i32_1 = arith.constant 0 : i32
    return %c0_i32, %c0_i32_0 : i32, i32
  }
  func.func @transform_3(%arg0: i32) -> (i32, i32) {
    %c0_i32 = arith.constant 0 : i32
    %c0_i32_0 = arith.constant 0 : i32
    %c0_i32_1 = arith.constant 0 : i32
    return %c0_i32, %c0_i32_0 : i32, i32
  }
  func.func @transform_4(%arg0: i32) -> (i32, i32) {
    %c0_i32 = arith.constant 0 : i32
    %c0_i32_0 = arith.constant 0 : i32
    %c0_i32_1 = arith.constant 0 : i32
    return %c0_i32, %c0_i32_0 : i32, i32
  }
  func.func @transform_5(%arg0: i32) -> (i32, i32) {
    %c0_i32 = arith.constant 0 : i32
    %c0_i32_0 = arith.constant 0 : i32
    %c0_i32_1 = arith.constant 0 : i32
    return %c0_i32, %c0_i32_0 : i32, i32
  }
  func.func @transform_6(%arg0: i32) -> (i32, i32) {
    %c0_i32 = arith.constant 0 : i32
    %c0_i32_0 = arith.constant 0 : i32
    %c0_i32_1 = arith.constant 0 : i32
    return %c0_i32, %c0_i32_0 : i32, i32
  }
  func.func @transform_7(%arg0: i32) -> (i32, i32) {
    %c0_i32 = arith.constant 0 : i32
    %c0_i32_0 = arith.constant 0 : i32
    %c0_i32_1 = arith.constant 0 : i32
    return %c0_i32, %c0_i32_0 : i32, i32
  }
  func.func @transform_8(%arg0: i32) -> (i32, i32) {
    %c0_i32 = arith.constant 0 : i32
    %c0_i32_0 = arith.constant 0 : i32
    %c0_i32_1 = arith.constant 0 : i32
    return %c0_i32, %c0_i32_0 : i32, i32
  }
  func.func @transform_9(%arg0: i32) -> (i32, i32) {
    %c0_i32 = arith.constant 0 : i32
    %c0_i32_0 = arith.constant 0 : i32
    %c0_i32_1 = arith.constant 0 : i32
    return %c0_i32, %c0_i32_0 : i32, i32
  }
  func.func @transform_10(%arg0: i32) -> (i32, i32) {
    %c0_i32 = arith.constant 0 : i32
    %c0_i32_0 = arith.constant 0 : i32
    %c0_i32_1 = arith.constant 0 : i32
    return %c0_i32, %c0_i32_0 : i32, i32
  }
  func.func @transform_11(%arg0: i32) -> (i32, i32) {
    %c0_i32 = arith.constant 0 : i32
    %c0_i32_0 = arith.constant 0 : i32
    %c0_i32_1 = arith.constant 0 : i32
    return %c0_i32, %c0_i32_0 : i32, i32
  }
  func.func @transform_12(%arg0: i32) -> (i32, i32) {
    %c0_i32 = arith.constant 0 : i32
    %c0_i32_0 = arith.constant 0 : i32
    %c0_i32_1 = arith.constant 0 : i32
    return %c0_i32, %c0_i32_0 : i32, i32
  }
  func.func @transform_13(%arg0: i32) -> (i32, i32) {
    %c0_i32 = arith.constant 0 : i32
    %c0_i32_0 = arith.constant 0 : i32
    return %c0_i32, %arg0 : i32, i32
  }
}

</mosaic_0001>

<llo_original>
// kernel: tpu_custom_call.1
$region0: #{tpu_custom_call.1}
  #allocation0 [shape = 'u32[]', space=smem, size = 0x4, offset = 0x4, fixed_abs, tag = 'smem constant byte address 0x4 - core index']
  #allocation1 [shape = 'u32[144,128]{1,0:T(1,128)}', space=vmem, size = 0x12000, scoped, tag = 'internal scratch']
  %s0 = inlined_call_operand.hbm [shape: f32[24,1024], index: 0, kind: input, shape index: {}]
  %s1 = inlined_call_operand.vmem [shape: f32[16,72], index: 1, kind: input, shape index: {}]
  %s2 = inlined_call_operand.vmem [shape: f32[16,1], index: 2, kind: input, shape index: {}]
  %s3 = inlined_call_operand.vmem [shape: f32[8,48], index: 3, kind: input, shape index: {}]
  %s4 = inlined_call_operand.vmem [shape: f32[8,1], index: 4, kind: input, shape index: {}]
  %s5 = inlined_call_operand.vmem [shape: f32[8,24], index: 5, kind: input, shape index: {}]
  %s6 = inlined_call_operand.vmem [shape: f32[8,1], index: 6, kind: input, shape index: {}]
  %s7 = inlined_call_operand.vmem [shape: f32[8,24], index: 7, kind: input, shape index: {}]
  %s8 = inlined_call_operand.vmem [shape: f32[8,1], index: 8, kind: input, shape index: {}]
  %s9 = inlined_call_operand.vmem [shape: f32[16,24], index: 9, kind: input, shape index: {}]
  %s10 = inlined_call_operand.vmem [shape: f32[16,1], index: 10, kind: input, shape index: {}]
  %s11 = inlined_call_operand.vmem [shape: f32[24,48], index: 11, kind: input, shape index: {}]
  %s12 = inlined_call_operand.vmem [shape: f32[24,1], index: 12, kind: input, shape index: {}]
  %s13 = inlined_call_operand.hbm [shape: f32[24,1024], index: 13, kind: output, shape index: {}]
  %s14 = sld [smem:[#allocation0]]
  $region89: #{tpu_custom_call.1} parent=0
    _
  %s16 = ssub.s32 1, %s14
  %s17 = scalar_select 0, %s16, %s14
  $region1: #{tpu_custom_call.1} parent=0
    #allocation2 [shape = 'u8[98304]{0}', space=vmem, size = 0x18000, scoped, tag = 'input window, operand 0']
    #allocation3 [shape = 's32[2]{0}', space=sflag, size = 0x8, scoped, tag = 'scoped memory for tpu_custom_call.1']
    #allocation4 [shape = 's32[2]{0}', space=sflag, size = 0x8, scoped, tag = 'scoped memory for tpu_custom_call.1']
    #allocation5 [shape = 'u8[98304]{0}', space=vmem, size = 0x18000, scoped, tag = 'output window, operand 0']
    %18 = vsyncpa [#allocation3], 0
    %s19 = scalar_lea.sflag [#allocation3], 1
    %20 = vsyncpa %s19, 0
    %21 = vsyncpa [#allocation4], 0
    %s22 = scalar_lea.sflag [#allocation4], 1
    %23 = vsyncpa %s22, 0
    loop: start=0, step=1, limit=4
    $region2: #{tpu_custom_call.1} parent=1 // loop_pre_header
      _
    $region3: #{tpu_custom_call.1} parent=1 // loop_header
      %s25 = sphi 0, %s29
      %p26 = scmp.ge.s32.totalorder %s25, 4
      %s35 = sphi 0, %s37
      %s38 = sphi 0, %s35
      %s39 = sphi 0, %s38
      %s55 = sphi 0, %s39
      %s59 = sphi 0, %s59
      %s61 = sphi 0, %s59
      %s62 = sphi 0, %s61
      %s76 = sphi 0, %s62
      %s80 = sphi 0, %s80
      %s82 = sphi 0, %s80
      %s83 = sphi 0, %s82
      %s97 = sphi 0, %s83
      %s101 = sphi 0, %s101
      %s103 = sphi 0, %s101
      %s104 = sphi 0, %s103
      %s118 = sphi 0, %s104
      %s122 = sphi 0, %s122
      %s124 = sphi 0, %s122
      %s125 = sphi 0, %s124
      %s139 = sphi 0, %s125
      %s143 = sphi 0, %s143
      %s145 = sphi 0, %s143
      %s146 = sphi 0, %s145
      %s160 = sphi 0, %s146
      %s164 = sphi 0, %s164
      %s166 = sphi 0, %s164
      %s167 = sphi 0, %s166
      %s181 = sphi 0, %s167
      %s185 = sphi 0, %s185
      %s187 = sphi 0, %s185
      %s188 = sphi 0, %s187
      %s202 = sphi 0, %s188
      %s206 = sphi 0, %s206
      %s208 = sphi 0, %s206
      %s209 = sphi 0, %s208
      %s223 = sphi 0, %s209
      %s227 = sphi 0, %s227
      %s229 = sphi 0, %s227
      %s230 = sphi 0, %s229
      %s244 = sphi 0, %s230
      %s248 = sphi 0, %s248
      %s250 = sphi 0, %s248
      %s251 = sphi 0, %s250
      %s265 = sphi 0, %s251
      %s269 = sphi 0, %s269
      %s271 = sphi 0, %s269
      %s272 = sphi 0, %s271
      %s286 = sphi 0, %s272
      %s290 = sphi 0, %s290
      %s292 = sphi 0, %s290
      %s293 = sphi 0, %s292
      %s307 = sphi 0, %s293
      %s313 = sphi 0, %s315
      %s316 = sphi 0, %s313
      %s317 = sphi 0, %s316
      %s333 = sphi 0, %s317
    $region4: #{tpu_custom_call.1} parent=1 // loop_header_branch
      %28 = sbr.rel (%p26) target = $region8
    $region5: #{tpu_custom_call.1} parent=1 // loop_body
      %s30 = ssub.s32 %s25, 1
      %s31 = ssub.s32 %s25, 2
      %s32 = sadd.s32 %s25, 1
      %s33 = ssub.s32 %s25, %s32
      %p34 = scmp.eq.s32.totalorder %s33, 0
      %s36 = sadd.s32 %s35, 1
      %s37 = scalar_select %p34, %s35, %s36
      %p40 = pneg %p34
      %p41 = scmp.eq.s32.totalorder %s25, 1
      %p42 = por %p40, %p41
      %p43 = scmp.ne.s32.totalorder %s35, %s38
      %p44 = scmp.eq.s32.totalorder %s25, 0
      %p45 = por %p43, %p44
      %p46 = scmp.ne.s32.totalorder %s35, %s38
      %p47 = scmp.eq.s32.totalorder %s30, 1
      %p48 = por %p46, %p47
      %p49 = scmp.ne.s32.totalorder %s38, %s39
      %p50 = scmp.eq.s32.totalorder %s30, 0
      %p51 = por %p49, %p50
      %p52 = scmp.ne.s32.totalorder %s38, %s39
      %p53 = scmp.eq.s32.totalorder %s31, 1
      %p54 = por %p52, %p53
      %p56 = scmp.ne.s32.totalorder %s39, %s55
      %p57 = scmp.eq.s32.totalorder %s31, 0
      %p58 = por %p56, %p57
      %s60 = sadd.s32 %s59, 1
      %p63 = scmp.eq.s32.totalorder %s25, 1
      %p64 = scmp.ne.s32.totalorder %s59, %s61
      %p65 = scmp.eq.s32.totalorder %s25, 0
      %p66 = por %p64, %p65
      %p67 = scmp.ne.s32.totalorder %s59, %s61
      %p68 = scmp.eq.s32.totalorder %s30, 1
      %p69 = por %p67, %p68
      %p70 = scmp.ne.s32.totalorder %s61, %s62
      %p71 = scmp.eq.s32.totalorder %s30, 0
      %p72 = por %p70, %p71
      %p73 = scmp.ne.s32.totalorder %s61, %s62
      %p74 = scmp.eq.s32.totalorder %s31, 1
      %p75 = por %p73, %p74
      %p77 = scmp.ne.s32.totalorder %s62, %s76
      %p78 = scmp.eq.s32.totalorder %s31, 0
      %p79 = por %p77, %p78
      %s81 = sadd.s32 %s80, 1
      %p84 = scmp.eq.s32.totalorder %s25, 1
      %p85 = scmp.ne.s32.totalorder %s80, %s82
      %p86 = scmp.eq.s32.totalorder %s25, 0
      %p87 = por %p85, %p86
      %p88 = scmp.ne.s32.totalorder %s80, %s82
      %p89 = scmp.eq.s32.totalorder %s30, 1
      %p90 = por %p88, %p89
      %p91 = scmp.ne.s32.totalorder %s82, %s83
      %p92 = scmp.eq.s32.totalorder %s30, 0
      %p93 = por %p91, %p92
      %p94 = scmp.ne.s32.totalorder %s82, %s83
      %p95 = scmp.eq.s32.totalorder %s31, 1
      %p96 = por %p94, %p95
      %p98 = scmp.ne.s32.totalorder %s83, %s97
      %p99 = scmp.eq.s32.totalorder %s31, 0
      %p100 = por %p98, %p99
      %s102 = sadd.s32 %s101, 1
      %p105 = scmp.eq.s32.totalorder %s25, 1
      %p106 = scmp.ne.s32.totalorder %s101, %s103
      %p107 = scmp.eq.s32.totalorder %s25, 0
      %p108 = por %p106, %p107
      %p109 = scmp.ne.s32.totalorder %s101, %s103
      %p110 = scmp.eq.s32.totalorder %s30, 1
      %p111 = por %p109, %p110
      %p112 = scmp.ne.s32.totalorder %s103, %s104
      %p113 = scmp.eq.s32.totalorder %s30, 0
      %p114 = por %p112, %p113
      %p115 = scmp.ne.s32.totalorder %s103, %s104
      %p116 = scmp.eq.s32.totalorder %s31, 1
      %p117 = por %p115, %p116
      %p119 = scmp.ne.s32.totalorder %s104, %s118
      %p120 = scmp.eq.s32.totalorder %s31, 0
      %p121 = por %p119, %p120
      %s123 = sadd.s32 %s122, 1
      %p126 = scmp.eq.s32.totalorder %s25, 1
      %p127 = scmp.ne.s32.totalorder %s122, %s124
      %p128 = scmp.eq.s32.totalorder %s25, 0
      %p129 = por %p127, %p128
      %p130 = scmp.ne.s32.totalorder %s122, %s124
      %p131 = scmp.eq.s32.totalorder %s30, 1
      %p132 = por %p130, %p131
      %p133 = scmp.ne.s32.totalorder %s124, %s125
      %p134 = scmp.eq.s32.totalorder %s30, 0
      %p135 = por %p133, %p134
      %p136 = scmp.ne.s32.totalorder %s124, %s125
      %p137 = scmp.eq.s32.totalorder %s31, 1
      %p138 = por %p136, %p137
      %p140 = scmp.ne.s32.totalorder %s125, %s139
      %p141 = scmp.eq.s32.totalorder %s31, 0
      %p142 = por %p140, %p141
      %s144 = sadd.s32 %s143, 1
      %p147 = scmp.eq.s32.totalorder %s25, 1
      %p148 = scmp.ne.s32.totalorder %s143, %s145
      %p149 = scmp.eq.s32.totalorder %s25, 0
      %p150 = por %p148, %p149
      %p151 = scmp.ne.s32.totalorder %s143, %s145
      %p152 = scmp.eq.s32.totalorder %s30, 1
      %p153 = por %p151, %p152
      %p154 = scmp.ne.s32.totalorder %s145, %s146
      %p155 = scmp.eq.s32.totalorder %s30, 0
      %p156 = por %p154, %p155
      %p157 = scmp.ne.s32.totalorder %s145, %s146
      %p158 = scmp.eq.s32.totalorder %s31, 1
      %p159 = por %p157, %p158
      %p161 = scmp.ne.s32.totalorder %s146, %s160
      %p162 = scmp.eq.s32.totalorder %s31, 0
      %p163 = por %p161, %p162
      %s165 = sadd.s32 %s164, 1
      %p168 = scmp.eq.s32.totalorder %s25, 1
      %p169 = scmp.ne.s32.totalorder %s164, %s166
      %p170 = scmp.eq.s32.totalorder %s25, 0
      %p171 = por %p169, %p170
      %p172 = scmp.ne.s32.totalorder %s164, %s166
      %p173 = scmp.eq.s32.totalorder %s30, 1
      %p174 = por %p172, %p173
      %p175 = scmp.ne.s32.totalorder %s166, %s167
      %p176 = scmp.eq.s32.totalorder %s30, 0
      %p177 = por %p175, %p176
      %p178 = scmp.ne.s32.totalorder %s166, %s167
      %p179 = scmp.eq.s32.totalorder %s31, 1
      %p180 = por %p178, %p179
      %p182 = scmp.ne.s32.totalorder %s167, %s181
      %p183 = scmp.eq.s32.totalorder %s31, 0
      %p184 = por %p182, %p183
      %s186 = sadd.s32 %s185, 1
      %p189 = scmp.eq.s32.totalorder %s25, 1
      %p190 = scmp.ne.s32.totalorder %s185, %s187
      %p191 = scmp.eq.s32.totalorder %s25, 0
      %p192 = por %p190, %p191
      %p193 = scmp.ne.s32.totalorder %s185, %s187
      %p194 = scmp.eq.s32.totalorder %s30, 1
      %p195 = por %p193, %p194
      %p196 = scmp.ne.s32.totalorder %s187, %s188
      %p197 = scmp.eq.s32.totalorder %s30, 0
      %p198 = por %p196, %p197
      %p199 = scmp.ne.s32.totalorder %s187, %s188
      %p200 = scmp.eq.s32.totalorder %s31, 1
      %p201 = por %p199, %p200
      %p203 = scmp.ne.s32.totalorder %s188, %s202
      %p204 = scmp.eq.s32.totalorder %s31, 0
      %p205 = por %p203, %p204
      %s207 = sadd.s32 %s206, 1
      %p210 = scmp.eq.s32.totalorder %s25, 1
      %p211 = scmp.ne.s32.totalorder %s206, %s208
      %p212 = scmp.eq.s32.totalorder %s25, 0
      %p213 = por %p211, %p212
      %p214 = scmp.ne.s32.totalorder %s206, %s208
      %p215 = scmp.eq.s32.totalorder %s30, 1
      %p216 = por %p214, %p215
      %p217 = scmp.ne.s32.totalorder %s208, %s209
      %p218 = scmp.eq.s32.totalorder %s30, 0
      %p219 = por %p217, %p218
      %p220 = scmp.ne.s32.totalorder %s208, %s209
      %p221 = scmp.eq.s32.totalorder %s31, 1
      %p222 = por %p220, %p221
      %p224 = scmp.ne.s32.totalorder %s209, %s223
      %p225 = scmp.eq.s32.totalorder %s31, 0
      %p226 = por %p224, %p225
      %s228 = sadd.s32 %s227, 1
      %p231 = scmp.eq.s32.totalorder %s25, 1
      %p232 = scmp.ne.s32.totalorder %s227, %s229
      %p233 = scmp.eq.s32.totalorder %s25, 0
      %p234 = por %p232, %p233
      %p235 = scmp.ne.s32.totalorder %s227, %s229
      %p236 = scmp.eq.s32.totalorder %s30, 1
      %p237 = por %p235, %p236
      %p238 = scmp.ne.s32.totalorder %s229, %s230
      %p239 = scmp.eq.s32.totalorder %s30, 0
      %p240 = por %p238, %p239
      %p241 = scmp.ne.s32.totalorder %s229, %s230
      %p242 = scmp.eq.s32.totalorder %s31, 1
      %p243 = por %p241, %p242
      %p245 = scmp.ne.s32.totalorder %s230, %s244
      %p246 = scmp.eq.s32.totalorder %s31, 0
      %p247 = por %p245, %p246
      %s249 = sadd.s32 %s248, 1
      %p252 = scmp.eq.s32.totalorder %s25, 1
      %p253 = scmp.ne.s32.totalorder %s248, %s250
      %p254 = scmp.eq.s32.totalorder %s25, 0
      %p255 = por %p253, %p254
      %p256 = scmp.ne.s32.totalorder %s248, %s250
      %p257 = scmp.eq.s32.totalorder %s30, 1
      %p258 = por %p256, %p257
      %p259 = scmp.ne.s32.totalorder %s250, %s251
      %p260 = scmp.eq.s32.totalorder %s30, 0
      %p261 = por %p259, %p260
      %p262 = scmp.ne.s32.totalorder %s250, %s251
      %p263 = scmp.eq.s32.totalorder %s31, 1
      %p264 = por %p262, %p263
      %p266 = scmp.ne.s32.totalorder %s251, %s265
      %p267 = scmp.eq.s32.totalorder %s31, 0
      %p268 = por %p266, %p267
      %s270 = sadd.s32 %s269, 1
      %p273 = scmp.eq.s32.totalorder %s25, 1
      %p274 = scmp.ne.s32.totalorder %s269, %s271
      %p275 = scmp.eq.s32.totalorder %s25, 0
      %p276 = por %p274, %p275
      %p277 = scmp.ne.s32.totalorder %s269, %s271
      %p278 = scmp.eq.s32.totalorder %s30, 1
      %p279 = por %p277, %p278
      %p280 = scmp.ne.s32.totalorder %s271, %s272
      %p281 = scmp.eq.s32.totalorder %s30, 0
      %p282 = por %p280, %p281
      %p283 = scmp.ne.s32.totalorder %s271, %s272
      %p284 = scmp.eq.s32.totalorder %s31, 1
      %p285 = por %p283, %p284
      %p287 = scmp.ne.s32.totalorder %s272, %s286
      %p288 = scmp.eq.s32.totalorder %s31, 0
      %p289 = por %p287, %p288
      %s291 = sadd.s32 %s290, 1
      %p294 = scmp.eq.s32.totalorder %s25, 1
      %p295 = scmp.ne.s32.totalorder %s290, %s292
      %p296 = scmp.eq.s32.totalorder %s25, 0
      %p297 = por %p295, %p296
      %p298 = scmp.ne.s32.totalorder %s290, %s292
      %p299 = scmp.eq.s32.totalorder %s30, 1
      %p300 = por %p298, %p299
      %p301 = scmp.ne.s32.totalorder %s292, %s293
      %p302 = scmp.eq.s32.totalorder %s30, 0
      %p303 = por %p301, %p302
      %p304 = scmp.ne.s32.totalorder %s292, %s293
      %p305 = scmp.eq.s32.totalorder %s31, 1
      %p306 = por %p304, %p305
      %p308 = scmp.ne.s32.totalorder %s293, %s307
      %p309 = scmp.eq.s32.totalorder %s31, 0
      %p310 = por %p308, %p309
      %s311 = ssub.s32 %s25, %s32
      %p312 = scmp.eq.s32.totalorder %s311, 0
      %s314 = sadd.s32 %s313, 1
      %s315 = scalar_select %p312, %s313, %s314
      %p318 = pneg %p312
      %p319 = scmp.eq.s32.totalorder %s25, 1
      %p320 = por %p318, %p319
      %p321 = scmp.ne.s32.totalorder %s313, %s316
      %p322 = scmp.eq.s32.totalorder %s25, 0
      %p323 = por %p321, %p322
      %p324 = scmp.ne.s32.totalorder %s313, %s316
      %p325 = scmp.eq.s32.totalorder %s30, 1
      %p326 = por %p324, %p325
      %p327 = scmp.ne.s32.totalorder %s316, %s317
      %p328 = scmp.eq.s32.totalorder %s30, 0
      %p329 = por %p327, %p328
      %p330 = scmp.ne.s32.totalorder %s316, %s317
      %p331 = scmp.eq.s32.totalorder %s31, 1
      %p332 = por %p330, %p331
      %p334 = scmp.ne.s32.totalorder %s317, %s333
      %p335 = scmp.eq.s32.totalorder %s31, 0
      %p336 = por %p334, %p335
      %p337 = scmp.le.s32.totalorder 1, %s25
      %p338 = scmp.lt.s32.totalorder %s25, 3
      %p339 = pnand %p337, %p338
      %p340 = pneg %p339
      // Predicated region
      $region9: #{tpu_custom_call.1} parent=5 // pred_check
        _
      $region10: #{tpu_custom_call.1} parent=5 // pred_check_branch
        %342 = sbr.rel (%p339) target = $region12
      $region11: #{tpu_custom_call.1} parent=5 // pred_region
        %s343 = ssub.s32 %s25, 1
        // Predicated region
        $region13: #{tpu_custom_call.1} parent=11 // pred_check
          %p344 = pneg %p72
        $region14: #{tpu_custom_call.1} parent=11 // pred_check_branch
          %346 = sbr.rel (%p344) target = $region16
        $region15: #{tpu_custom_call.1} parent=11 // pred_region
          _
        $region16: #{tpu_custom_call.1} parent=11 // pred_fallthru
          _
        // Predicated region
        $region17: #{tpu_custom_call.1} parent=11 // pred_check
          %p347 = pneg %p93
        $region18: #{tpu_custom_call.1} parent=11 // pred_check_branch
          %349 = sbr.rel (%p347) target = $region20
        $region19: #{tpu_custom_call.1} parent=11 // pred_region
          _
        $region20: #{tpu_custom_call.1} parent=11 // pred_fallthru
          _
        // Predicated region
        $region21: #{tpu_custom_call.1} parent=11 // pred_check
          %p350 = pneg %p114
        $region22: #{tpu_custom_call.1} parent=11 // pred_check_branch
          %352 = sbr.rel (%p350) target = $region24
        $region23: #{tpu_custom_call.1} parent=11 // pred_region
          _
        $region24: #{tpu_custom_call.1} parent=11 // pred_fallthru
          _
        // Predicated region
        $region25: #{tpu_custom_call.1} parent=11 // pred_check
          %p353 = pneg %p135
        $region26: #{tpu_custom_call.1} parent=11 // pred_check_branch
          %355 = sbr.rel (%p353) target = $region28
        $region27: #{tpu_custom_call.1} parent=11 // pred_region
          _
        $region28: #{tpu_custom_call.1} parent=11 // pred_fallthru
          _
        // Predicated region
        $region29: #{tpu_custom_call.1} parent=11 // pred_check
          %p356 = pneg %p156
        $region30: #{tpu_custom_call.1} parent=11 // pred_check_branch
          %358 = sbr.rel (%p356) target = $region32
        $region31: #{tpu_custom_call.1} parent=11 // pred_region
          _
        $region32: #{tpu_custom_call.1} parent=11 // pred_fallthru
          _
        // Predicated region
        $region33: #{tpu_custom_call.1} parent=11 // pred_check
          %p359 = pneg %p177
        $region34: #{tpu_custom_call.1} parent=11 // pred_check_branch
          %361 = sbr.rel (%p359) target = $region36
        $region35: #{tpu_custom_call.1} parent=11 // pred_region
          _
        $region36: #{tpu_custom_call.1} parent=11 // pred_fallthru
          _
        // Predicated region
        $region37: #{tpu_custom_call.1} parent=11 // pred_check
          %p362 = pneg %p198
        $region38: #{tpu_custom_call.1} parent=11 // pred_check_branch
          %364 = sbr.rel (%p362) target = $region40
        $region39: #{tpu_custom_call.1} parent=11 // pred_region
          _
        $region40: #{tpu_custom_call.1} parent=11 // pred_fallthru
          _
        // Predicated region
        $region41: #{tpu_custom_call.1} parent=11 // pred_check
          %p365 = pneg %p219
        $region42: #{tpu_custom_call.1} parent=11 // pred_check_branch
          %367 = sbr.rel (%p365) target = $region44
        $region43: #{tpu_custom_call.1} parent=11 // pred_region
          _
        $region44: #{tpu_custom_call.1} parent=11 // pred_fallthru
          _
        // Predicated region
        $region45: #{tpu_custom_call.1} parent=11 // pred_check
          %p368 = pneg %p240
        $region46: #{tpu_custom_call.1} parent=11 // pred_check_branch
          %370 = sbr.rel (%p368) target = $region48
        $region47: #{tpu_custom_call.1} parent=11 // pred_region
          _
        $region48: #{tpu_custom_call.1} parent=11 // pred_fallthru
          _
        // Predicated region
        $region49: #{tpu_custom_call.1} parent=11 // pred_check
          %p371 = pneg %p261
        $region50: #{tpu_custom_call.1} parent=11 // pred_check_branch
          %373 = sbr.rel (%p371) target = $region52
        $region51: #{tpu_custom_call.1} parent=11 // pred_region
          _
        $region52: #{tpu_custom_call.1} parent=11 // pred_fallthru
          _
        // Predicated region
        $region53: #{tpu_custom_call.1} parent=11 // pred_check
          %p374 = pneg %p282
        $region54: #{tpu_custom_call.1} parent=11 // pred_check_branch
          %376 = sbr.rel (%p374) target = $region56
        $region55: #{tpu_custom_call.1} parent=11 // pred_region
          _
        $region56: #{tpu_custom_call.1} parent=11 // pred_fallthru
          _
        // Predicated region
        $region57: #{tpu_custom_call.1} parent=11 // pred_check
          %p377 = pneg %p303
        $region58: #{tpu_custom_call.1} parent=11 // pred_check_branch
          %379 = sbr.rel (%p377) target = $region60
        $region59: #{tpu_custom_call.1} parent=11 // pred_region
          _
        $region60: #{tpu_custom_call.1} parent=11 // pred_fallthru
          _
      $region12: #{tpu_custom_call.1} parent=5 // pred_fallthru
        _
      %p380 = scmp.lt.s32.totalorder %s25, 2
      // Predicated region
      $region61: #{tpu_custom_call.1} parent=5 // pred_check
        %p381 = pneg %p380
      $region62: #{tpu_custom_call.1} parent=5 // pred_check_branch
        %383 = sbr.rel (%p381) target = $region64
      $region63: #{tpu_custom_call.1} parent=5 // pred_region
        // Predicated region
        $region65: #{tpu_custom_call.1} parent=63 // pred_check
          %p384 = pneg %p45
        $region66: #{tpu_custom_call.1} parent=63 // pred_check_branch
          %386 = sbr.rel (%p384) target = $region68
        $region67: #{tpu_custom_call.1} parent=63 // pred_region
          %s387 = sand.u32 %s35, 1
          %s388 = scalar_lea.sflag [#allocation3], %s387
          %s389 = sand.u32 %s35, 1
          %s390 = smul.addr %s389, 96
          %s391 = scalar_lea.vmem [#allocation2], %s390
          %s392 = smul.u32 4, %s25
          %s394 = ssub.s32 1536, 1536
          %395 = vsyncadd %s388, %s394
          %s396 = smul.addr %s392, 128
          %s397 = scalar_lea.hbm %s0, %s396
          %s398 = sshll.u32 %s391, 4
          %s399 = int_to_ptr.vmem [resolvable:$true] %s398
          %404 = dma.hbm_to_vmem [thread:$0]  %s397, 1536, %s399, %s388, 1024, 512, 32
        $region68: #{tpu_custom_call.1} parent=63 // pred_fallthru
          _
      $region64: #{tpu_custom_call.1} parent=5 // pred_fallthru
        _
      %p405 = scmp.le.s32.totalorder 1, %s25
      %p406 = scmp.lt.s32.totalorder %s25, 3
      %p407 = pnand %p405, %p406
      %p408 = pneg %p407
      // Predicated region
      $region69: #{tpu_custom_call.1} parent=5 // pred_check
        _
      $region70: #{tpu_custom_call.1} parent=5 // pred_check_branch
        %410 = sbr.rel (%p407) target = $region72
      $region71: #{tpu_custom_call.1} parent=5 // pred_region
        %s411 = ssub.s32 %s25, 1
        %s412 = sand.u32 %s38, 1
        %s413 = scalar_lea.sflag [#allocation3], %s412
        %s414 = sand.u32 %s38, 1
        %s415 = smul.addr %s414, 96
        %s416 = scalar_lea.vmem [#allocation2], %s415
        // Predicated region
        $region73: #{tpu_custom_call.1} parent=71 // pred_check
          %p417 = pneg %p51
        $region74: #{tpu_custom_call.1} parent=71 // pred_check_branch
          %419 = sbr.rel (%p417) target = $region76
        $region75: #{tpu_custom_call.1} parent=71 // pred_region
          %420 = dma.done %s413, 1536
        $region76: #{tpu_custom_call.1} parent=71 // pred_fallthru
          _
        %s421 = sand.u32 %s38, 1
        %s422 = scalar_lea.sflag [#allocation3], %s421
        %s423 = sand.u32 %s38, 1
        %s424 = smul.addr %s423, 96
        %s425 = scalar_lea.vmem [#allocation2], %s424
        %p426 = pneg %p51
        %p427 = pneg %p48
        %p428 = pneg %p72
        %p429 = pneg %p69
        %p430 = pneg %p93
        %p431 = pneg %p90
        %p432 = pneg %p114
        %p433 = pneg %p111
        %p434 = pneg %p135
        %p435 = pneg %p132
        %p436 = pneg %p156
        %p437 = pneg %p153
        %p438 = pneg %p177
        %p439 = pneg %p174
        %p440 = pneg %p198
        %p441 = pneg %p195
        %p442 = pneg %p219
        %p443 = pneg %p216
        %p444 = pneg %p240
        %p445 = pneg %p237
        %p446 = pneg %p261
        %p447 = pneg %p258
        %p448 = pneg %p282
        %p449 = pneg %p279
        %p450 = pneg %p303
        %p451 = pneg %p300
        %p452 = pneg %p329
        %p453 = pneg %p326
        %s454 = sand.u32 %s316, 1
        %s455 = scalar_lea.sflag [#allocation4], %s454
        %s456 = sand.u32 %s316, 1
        %s457 = smul.addr %s456, 96
        %s458 = scalar_lea.vmem [#allocation5], %s457
        %s459 = smul.u32 4, %s30
        %s460 = smul.u32 4, %s30
        %v461 = vlaneseq
        %v462 = vand.u32 %v461, 127
        %v463 = vadd.s32 %v462, 128
        %v464 = vadd.s32 %v462, 256
        %v465 = vadd.s32 %v462, 384
        %vm466 = vcmp.lt.s32.totalorder %v462, 0
        %v467 = vsub.s32 0, %v462
        %v468 = vsel %vm466, %v467, %v462
        %v469 = vshrl.u32 %v468, 4
        %v470 = vand.u32 %v468, 15
        %v471 = vsub.s32 0, %v470
        %v472 = vsel %vm466, %v471, %v470
        %vm473 = vcmp.lt.s32.totalorder %v463, 0
        %v474 = vsub.s32 0, %v463
        %v475 = vsel %vm473, %v474, %v463
        %v476 = vshrl.u32 %v475, 4
        %v477 = vand.u32 %v475, 15
        %v478 = vsub.s32 0, %v477
        %v479 = vsel %vm473, %v478, %v477
        %vm480 = vcmp.lt.s32.totalorder %v464, 0
        %v481 = vsub.s32 0, %v464
        %v482 = vsel %vm480, %v481, %v464
        %v483 = vshrl.u32 %v482, 4
        %v484 = vand.u32 %v482, 15
        %v485 = vsub.s32 0, %v484
        %v486 = vsel %vm480, %v485, %v484
        %vm487 = vcmp.lt.s32.totalorder %v465, 0
        %v488 = vsub.s32 0, %v465
        %v489 = vsel %vm487, %v488, %v465
        %v490 = vshrl.u32 %v489, 4
        %v491 = vand.u32 %v489, 15
        %v492 = vsub.s32 0, %v491
        %v493 = vsel %vm487, %v492, %v491
        %vm494 = vcmp.ne.s32.totalorder %v472, 0
        %vm495 = vcmp.ne.s32.totalorder %v479, 0
        %vm496 = vcmp.ne.s32.totalorder %v486, 0
        %vm497 = vcmp.ne.s32.totalorder %v493, 0
        %vm498 = vcmp.lt.s32.totalorder %v472, 0
        %vm499 = vcmp.lt.s32.totalorder %v479, 0
        %vm500 = vcmp.lt.s32.totalorder %v486, 0
        %vm501 = vcmp.lt.s32.totalorder %v493, 0
        %vm502 = vmand %vm498, %vm494
        %vm503 = vmand %vm499, %vm495
        %vm504 = vmand %vm500, %vm496
        %vm505 = vmand %vm501, %vm497
        %v506 = vadd.s32 %v472, 16
        %v507 = vadd.s32 %v479, 16
        %v508 = vadd.s32 %v486, 16
        %v509 = vadd.s32 %v493, 16
        %v510 = vsel %vm502, %v506, %v472
        %v511 = vsel %vm503, %v507, %v479
        %v512 = vsel %vm504, %v508, %v486
        %v513 = vsel %vm505, %v509, %v493
        %vm514 = vcmp.ne.s32.totalorder %v510, 0
        %vm515 = vcmp.ne.s32.totalorder %v511, 0
        %vm516 = vcmp.ne.s32.totalorder %v512, 0
        %vm517 = vcmp.ne.s32.totalorder %v513, 0
        %v518 = vsel %vm514, 1, 0
        %v519 = vsel %vm515, 1, 0
        %v520 = vsel %vm516, 1, 0
        %v521 = vsel %vm517, 1, 0
        %v522 = vcvt.s32.f32 %v518
        %v523 = vcvt.s32.f32 %v519
        %v524 = vcvt.s32.f32 %v520
        %v525 = vcvt.s32.f32 %v521
        %vm526 = vcmp.ne.s32.totalorder %v510, 15
        %vm527 = vcmp.ne.s32.totalorder %v511, 15
        %vm528 = vcmp.ne.s32.totalorder %v512, 15
        %vm529 = vcmp.ne.s32.totalorder %v513, 15
        %v530 = vsel %vm526, 1, 0
        %v531 = vsel %vm527, 1, 0
        %v532 = vsel %vm528, 1, 0
        %v533 = vsel %vm529, 1, 0
        %v534 = vcvt.s32.f32 %v530
        %v535 = vcvt.s32.f32 %v531
        %v536 = vcvt.s32.f32 %v532
        %v537 = vcvt.s32.f32 %v533
        %v538 = vld [vmem:[%s416] sm:$0xff]
        %v539 = vld [vmem:[%s416 + $0x8] sm:$0xff]
        %v540 = vld [vmem:[%s416 + $0x10] sm:$0xff]
        %v541 = vld [vmem:[%s416 + $0x18] sm:$0xff]
        %v542 = vld [vmem:[%s416 + $0x20] sm:$0xff]
        %v543 = vld [vmem:[%s416 + $0x28] sm:$0xff]
        %v544 = vld [vmem:[%s416 + $0x30] sm:$0xff]
        %v545 = vld [vmem:[%s416 + $0x38] sm:$0xff]
        %v546 = vld [vmem:[%s416 + $0x40] sm:$0xff]
        %v547 = vld [vmem:[%s416 + $0x48] sm:$0xff]
        %v548 = vld [vmem:[%s416 + $0x50] sm:$0xff]
        %v549 = vld [vmem:[%s416 + $0x58] sm:$0xff]
        %v550 = vld [vmem:[%s1] sm:$0xff]
        %v551 = vld [vmem:[%s1 + $0x8] sm:$0xff]
        %v552 = vld [vmem:[%s2] sm:$0xff]
        %v553 = vld [vmem:[%s2 + $0x8] sm:$0xff]
        %554 = vrot.lane.b32.xlu0 %v538, 1
        %v555 = vpop.permute.xlu0 %554
        %556 = vrot.lane.b32.xlu0 %v542, 1
        %v557 = vpop.permute.xlu0 %556
        %558 = vrot.lane.b32.xlu0 %v546, 1
        %v559 = vpop.permute.xlu0 %558
        %560 = vrot.lane.b32.xlu0 %v539, 1
        %v561 = vpop.permute.xlu0 %560
        %562 = vrot.lane.b32.xlu0 %v543, 1
        %v563 = vpop.permute.xlu0 %562
        %564 = vrot.lane.b32.xlu0 %v547, 1
        %v565 = vpop.permute.xlu0 %564
        %566 = vrot.lane.b32.xlu0 %v540, 1
        %v567 = vpop.permute.xlu0 %566
        %568 = vrot.lane.b32.xlu0 %v544, 1
        %v569 = vpop.permute.xlu0 %568
        %570 = vrot.lane.b32.xlu0 %v548, 1
        %v571 = vpop.permute.xlu0 %570
        %572 = vrot.lane.b32.xlu0 %v541, 1
        %v573 = vpop.permute.xlu0 %572
        %574 = vrot.lane.b32.xlu0 %v545, 1
        %v575 = vpop.permute.xlu0 %574
        %576 = vrot.lane.b32.xlu0 %v549, 1
        %v577 = vpop.permute.xlu0 %576
        %vm578 = vcmp.lt.s32.totalorder %v462, 1
        %v579 = vsel %vm578, %v567, %v573
        %v580 = vsel %vm578, %v569, %v575
        %v581 = vsel %vm578, %v571, %v577
        %v582 = vsel %vm578, %v561, %v567
        %v583 = vsel %vm578, %v563, %v569
        %v584 = vsel %vm578, %v565, %v571
        %v585 = vsel %vm578, %v555, %v561
        %v586 = vsel %vm578, %v557, %v563
        %v587 = vsel %vm578, %v559, %v565
        %v588 = vsel %vm578, %v573, %v555
        %v589 = vsel %vm578, %v575, %v557
        %v590 = vsel %vm578, %v577, %v559
        %v591 = vmul.f32 %v588, %v522
        %v592 = vmul.f32 %v585, %v523
        %v593 = vmul.f32 %v582, %v524
        %v594 = vmul.f32 %v579, %v525
        %v595 = vmul.f32 %v589, %v522
        %v596 = vmul.f32 %v586, %v523
        %v597 = vmul.f32 %v583, %v524
        %v598 = vmul.f32 %v580, %v525
        %v599 = vmul.f32 %v590, %v522
        %v600 = vmul.f32 %v587, %v523
        %v601 = vmul.f32 %v584, %v524
        %v602 = vmul.f32 %v581, %v525
        %603 = vrot.lane.b32.xlu0 %v538, 127
        %v604 = vpop.permute.xlu0 %603
        %605 = vrot.lane.b32.xlu0 %v542, 127
        %v606 = vpop.permute.xlu0 %605
        %607 = vrot.lane.b32.xlu0 %v546, 127
        %v608 = vpop.permute.xlu0 %607
        %609 = vrot.lane.b32.xlu0 %v539, 127
        %v610 = vpop.permute.xlu0 %609
        %611 = vrot.lane.b32.xlu0 %v543, 127
        %v612 = vpop.permute.xlu0 %611
        %613 = vrot.lane.b32.xlu0 %v547, 127
        %v614 = vpop.permute.xlu0 %613
        %615 = vrot.lane.b32.xlu0 %v540, 127
        %v616 = vpop.permute.xlu0 %615
        %617 = vrot.lane.b32.xlu0 %v544, 127
        %v618 = vpop.permute.xlu0 %617
        %619 = vrot.lane.b32.xlu0 %v548, 127
        %v620 = vpop.permute.xlu0 %619
        %621 = vrot.lane.b32.xlu0 %v541, 127
        %v622 = vpop.permute.xlu0 %621
        %623 = vrot.lane.b32.xlu0 %v545, 127
        %v624 = vpop.permute.xlu0 %623
        %625 = vrot.lane.b32.xlu0 %v549, 127
        %v626 = vpop.permute.xlu0 %625
        %vm627 = vcmp.lt.s32.totalorder %v462, 127
        %v628 = vsel %vm627, %v616, %v622
        %v629 = vsel %vm627, %v618, %v624
        %v630 = vsel %vm627, %v620, %v626
        %v631 = vsel %vm627, %v610, %v616
        %v632 = vsel %vm627, %v612, %v618
        %v633 = vsel %vm627, %v614, %v620
        %v634 = vsel %vm627, %v604, %v610
        %v635 = vsel %vm627, %v606, %v612
        %v636 = vsel %vm627, %v608, %v614
        %v637 = vsel %vm627, %v622, %v604
        %v638 = vsel %vm627, %v624, %v606
        %v639 = vsel %vm627, %v626, %v608
        %v640 = vmul.f32 %v634, %v534
        %v641 = vmul.f32 %v631, %v535
        %v642 = vmul.f32 %v628, %v536
        %v643 = vmul.f32 %v637, %v537
        %v644 = vmul.f32 %v635, %v534
        %v645 = vmul.f32 %v632, %v535
        %v646 = vmul.f32 %v629, %v536
        %v647 = vmul.f32 %v638, %v537
        %v648 = vmul.f32 %v636, %v534
        %v649 = vmul.f32 %v633, %v535
        %v650 = vmul.f32 %v630, %v536
        %v651 = vmul.f32 %v639, %v537
        %653 = vset.pattern.permute.xlu0 0
        %654 = vperm.xlu0 %653, %v552
        %v655 = vpop.permute.xlu0 %654
        %658 = vset.pattern.permute.xlu0 0
        %659 = vperm.xlu0 %658, %v553
        %v660 = vpop.permute.xlu0 %659
        %vm662 = vcmask 588800
        %v664 = vsel %vm662, %v550, 0
        %v667 = vsel %vm662, %v551, 0
        %669 = vmatprep.subr.mxu0 %v592
        %670 = vmatpush1.msra.mxu0 %v591
        %671 = vmatprep.subr.mxu0 %v596
        %672 = vmatpush1.msra.mxu0 %v595
        %673 = vmatprep.subr.mxu0 %v600
        %674 = vmatpush1.msra.mxu0 %v599
        %675 = vmatprep.subr.mxu0 %v539
        %676 = vmatpush1.msra.mxu0 %v538
        %677 = vmatprep.subr.mxu0 %v543
        %678 = vmatpush1.msra.mxu0 %v542
        %679 = vmatprep.subr.mxu0 %v547
        %680 = vmatpush1.msra.mxu0 %v546
        %681 = vmatprep.subr.mxu0 %v641
        %682 = vmatpush1.msra.mxu0 %v640
        %683 = vmatprep.subr.mxu0 %v645
        %684 = vmatpush1.msra.mxu0 %v644
        %685 = vmatprep.subr.mxu0 %v649
        %686 = vmatpush1.msra.mxu0 %v648
        %687 = vmatprep.subr.mxu0 0.0
        %688 = vmatpush1.msra.mxu0 0.0
        %689 = vmatprep.subr.mxu0 0.0
        %690 = vmatpush1.msra.mxu0 0.0
        %691 = vmatprep.subr.mxu0 0.0
        %692 = vmatpush1.msra.mxu0 0.0
        %693 = vmatprep.subr.mxu0 0.0
        %694 = vmatpush1.msra.mxu0 0.0
        %695 = vmatprep.subr.mxu0 0.0
        %696 = vmatpush1.msra.mxu0 0.0
        %697 = vmatprep.subr.mxu0 0.0
        %698 = vmatpush1.msra.mxu0 0.0
        %699 = vmatprep.subr.mxu0 0.0
        %700 = vmatpush1.msra.mxu0 0.0
        %701 = vmatprep.subr.mxu0 0.0
        %702 = vmatpush1.msra.mxu0 0.0
        %703 = vmatprep.subr.mxu0 0.0
        %704 = vmatpush1.msra.mxu0 0.0
        %705 = vmatprep.subr.mxu0 0.0
        %706 = vmatpush1.msra.mxu0 0.0
        %707 = vmatprep.subr.mxu0 0.0
        %708 = vmatpush1.msra.mxu0 0.0
        %709 = vmatprep.subr.mxu0 0.0
        %710 = vmatpush1.msra.mxu0 0.0
        %711 = vmatprep.subr.mxu0 0.0
        %712 = vmatpush1.msra.mxu0 0.0
        %713 = vmatprep.subr.mxu0 0.0
        %714 = vmatpush1.msra.mxu0 0.0
        %715 = vmatprep.subr.mxu0 0.0
        %716 = vmatpush1.msra.mxu0 0.0
        %717 = vmatprep.subr.mxu0 0.0
        %718 = vmatpush1.msra.mxu0 0.0
        %719 = vmatprep.subr.mxu0 0.0
        %720 = vmatpush1.msra.mxu0 0.0
        %721 = vmatprep.subr.mxu0 0.0
        %722 = vmatpush1.msra.mxu0 0.0
        %723 = vmatprep.subr.mxu0 0.0
        %724 = vmatpush1.msra.mxu0 0.0
        %725 = vmatprep.subr.mxu0 0.0
        %726 = vmatpush1.msra.mxu0 0.0
        %727 = vmatprep.subr.mxu0 0.0
        %728 = vmatpush1.msra.mxu0 0.0
        %729 = vmatprep.subr.mxu0 0.0
        %730 = vmatpush1.msra.mxu0 0.0
        %731 = vmatprep.subr.mxu0 0.0
        %732 = vmatpush1.msra.mxu0 0.0
        %733 = vmatprep.mubr.f32.mxu0 0.0
        %734 = vmatmul.mubr.f32.gmra.mrb[0].mxu0 %v664
        %v735 = vpop.f32.mrb[0].mxu0
        %v736 = vadd.f32 %v655, %v735
        %v737 = vpop.f32.mrb[0].mxu0
        %v738 = vadd.f32 %v655, %v737
        %739 = vmatprep.mubr.f32.mxu0 0.0
        %740 = vmatmul.mubr.f32.gmra.mrb[0].mxu0 %v667
        %v741 = vpop.f32.mrb[0].mxu0
        %v742 = vadd.f32 %v660, %v741
        %v743 = vpop.f32.mrb[0].mxu0
        %v744 = vadd.f32 %v660, %v743
        %745 = vdwg.mxu0
        %746 = vmatprep.subr.mxu0 %v594
        %747 = vmatpush1.msra.mxu0 %v593
        %748 = vmatprep.subr.mxu0 %v598
        %749 = vmatpush1.msra.mxu0 %v597
        %750 = vmatprep.subr.mxu0 %v602
        %751 = vmatpush1.msra.mxu0 %v601
        %752 = vmatprep.subr.mxu0 %v541
        %753 = vmatpush1.msra.mxu0 %v540
        %754 = vmatprep.subr.mxu0 %v545
        %755 = vmatpush1.msra.mxu0 %v544
        %756 = vmatprep.subr.mxu0 %v549
        %757 = vmatpush1.msra.mxu0 %v548
        %758 = vmatprep.subr.mxu0 %v643
        %759 = vmatpush1.msra.mxu0 %v642
        %760 = vmatprep.subr.mxu0 %v647
        %761 = vmatpush1.msra.mxu0 %v646
        %762 = vmatprep.subr.mxu0 %v651
        %763 = vmatpush1.msra.mxu0 %v650
        %764 = vmatprep.subr.mxu0 0.0
        %765 = vmatpush1.msra.mxu0 0.0
        %766 = vmatprep.subr.mxu0 0.0
        %767 = vmatpush1.msra.mxu0 0.0
        %768 = vmatprep.subr.mxu0 0.0
        %769 = vmatpush1.msra.mxu0 0.0
        %770 = vmatprep.subr.mxu0 0.0
        %771 = vmatpush1.msra.mxu0 0.0
        %772 = vmatprep.subr.mxu0 0.0
        %773 = vmatpush1.msra.mxu0 0.0
        %774 = vmatprep.subr.mxu0 0.0
        %775 = vmatpush1.msra.mxu0 0.0
        %776 = vmatprep.subr.mxu0 0.0
        %777 = vmatpush1.msra.mxu0 0.0
        %778 = vmatprep.subr.mxu0 0.0
        %779 = vmatpush1.msra.mxu0 0.0
        %780 = vmatprep.subr.mxu0 0.0
        %781 = vmatpush1.msra.mxu0 0.0
        %782 = vmatprep.subr.mxu0 0.0
        %783 = vmatpush1.msra.mxu0 0.0
        %784 = vmatprep.subr.mxu0 0.0
        %785 = vmatpush1.msra.mxu0 0.0
        %786 = vmatprep.subr.mxu0 0.0
        %787 = vmatpush1.msra.mxu0 0.0
        %788 = vmatprep.subr.mxu0 0.0
        %789 = vmatpush1.msra.mxu0 0.0
        %790 = vmatprep.subr.mxu0 0.0
        %791 = vmatpush1.msra.mxu0 0.0
        %792 = vmatprep.subr.mxu0 0.0
        %793 = vmatpush1.msra.mxu0 0.0
        %794 = vmatprep.subr.mxu0 0.0
        %795 = vmatpush1.msra.mxu0 0.0
        %796 = vmatprep.subr.mxu0 0.0
        %797 = vmatpush1.msra.mxu0 0.0
        %798 = vmatprep.subr.mxu0 0.0
        %799 = vmatpush1.msra.mxu0 0.0
        %800 = vmatprep.subr.mxu0 0.0
        %801 = vmatpush1.msra.mxu0 0.0
        %802 = vmatprep.subr.mxu0 0.0
        %803 = vmatpush1.msra.mxu0 0.0
        %804 = vmatprep.subr.mxu0 0.0
        %805 = vmatpush1.msra.mxu0 0.0
        %806 = vmatprep.subr.mxu0 0.0
        %807 = vmatpush1.msra.mxu0 0.0
        %808 = vmatprep.subr.mxu0 0.0
        %809 = vmatpush1.msra.mxu0 0.0
        %810 = vmatprep.mubr.f32.mxu0 0.0
        %811 = vmatmul.mubr.f32.gmra.mrb[0].mxu0 %v664
        %v812 = vpop.f32.mrb[0].mxu0
        %v813 = vadd.f32 %v655, %v812
        %v814 = vpop.f32.mrb[0].mxu0
        %v815 = vadd.f32 %v655, %v814
        %816 = vmatprep.mubr.f32.mxu0 0.0
        %817 = vmatmul.mubr.f32.gmra.mrb[0].mxu0 %v667
        %v818 = vpop.f32.mrb[0].mxu0
        %v819 = vadd.f32 %v660, %v818
        %v820 = vpop.f32.mrb[0].mxu0
        %v821 = vadd.f32 %v660, %v820
        %822 = vdwg.mxu0
        %v823 = vmax.f32 %v736, 0.0
        %v824 = vmax.f32 %v738, 0.0
        %v825 = vmax.f32 %v813, 0.0
        %v826 = vmax.f32 %v815, 0.0
        %v827 = vmax.f32 %v742, 0.0
        %v828 = vmax.f32 %v744, 0.0
        %v829 = vmax.f32 %v819, 0.0
        %v830 = vmax.f32 %v821, 0.0
        %v831 = vld [vmem:[%s3] sm:$0xff]
        %v832 = vld [vmem:[%s4] sm:$0xff]
        %833 = vrot.lane.b32.xlu0 %v823, 1
        %v834 = vpop.permute.xlu0 %833
        %835 = vrot.lane.b32.xlu0 %v827, 1
        %v836 = vpop.permute.xlu0 %835
        %837 = vrot.lane.b32.xlu0 %v824, 1
        %v838 = vpop.permute.xlu0 %837
        %839 = vrot.lane.b32.xlu0 %v828, 1
        %v840 = vpop.permute.xlu0 %839
        %841 = vrot.lane.b32.xlu0 %v825, 1
        %v842 = vpop.permute.xlu0 %841
        %843 = vrot.lane.b32.xlu0 %v829, 1
        %v844 = vpop.permute.xlu0 %843
        %845 = vrot.lane.b32.xlu0 %v826, 1
        %v846 = vpop.permute.xlu0 %845
        %847 = vrot.lane.b32.xlu0 %v830, 1
        %v848 = vpop.permute.xlu0 %847
        %v849 = vsel %vm578, %v842, %v846
        %v850 = vsel %vm578, %v844, %v848
        %v851 = vsel %vm578, %v838, %v842
        %v852 = vsel %vm578, %v840, %v844
        %v853 = vsel %vm578, %v834, %v838
        %v854 = vsel %vm578, %v836, %v840
        %v855 = vsel %vm578, %v846, %v834
        %v856 = vsel %vm578, %v848, %v836
        %v857 = vmul.f32 %v855, %v522
        %v858 = vmul.f32 %v853, %v523
        %v859 = vmul.f32 %v851, %v524
        %v860 = vmul.f32 %v849, %v525
        %v861 = vmul.f32 %v856, %v522
        %v862 = vmul.f32 %v854, %v523
        %v863 = vmul.f32 %v852, %v524
        %v864 = vmul.f32 %v850, %v525
        %865 = vrot.lane.b32.xlu0 %v823, 127
        %v866 = vpop.permute.xlu0 %865
        %867 = vrot.lane.b32.xlu0 %v827, 127
        %v868 = vpop.permute.xlu0 %867
        %869 = vrot.lane.b32.xlu0 %v824, 127
        %v870 = vpop.permute.xlu0 %869
        %871 = vrot.lane.b32.xlu0 %v828, 127
        %v872 = vpop.permute.xlu0 %871
        %873 = vrot.lane.b32.xlu0 %v825, 127
        %v874 = vpop.permute.xlu0 %873
        %875 = vrot.lane.b32.xlu0 %v829, 127
        %v876 = vpop.permute.xlu0 %875
        %877 = vrot.lane.b32.xlu0 %v826, 127
        %v878 = vpop.permute.xlu0 %877
        %879 = vrot.lane.b32.xlu0 %v830, 127
        %v880 = vpop.permute.xlu0 %879
        %v881 = vsel %vm627, %v874, %v878
        %v882 = vsel %vm627, %v876, %v880
        %v883 = vsel %vm627, %v870, %v874
        %v884 = vsel %vm627, %v872, %v876
        %v885 = vsel %vm627, %v866, %v870
        %v886 = vsel %vm627, %v868, %v872
        %v887 = vsel %vm627, %v878, %v866
        %v888 = vsel %vm627, %v880, %v868
        %v889 = vmul.f32 %v885, %v534
        %v890 = vmul.f32 %v883, %v535
        %v891 = vmul.f32 %v881, %v536
        %v892 = vmul.f32 %v887, %v537
        %v893 = vmul.f32 %v886, %v534
        %v894 = vmul.f32 %v884, %v535
        %v895 = vmul.f32 %v882, %v536
        %v896 = vmul.f32 %v888, %v537
        %898 = vset.pattern.permute.xlu0 0
        %899 = vperm.xlu0 %898, %v832
        %v900 = vpop.permute.xlu0 %899
        %vm902 = vcmask 392192
        %v904 = vsel %vm902, %v831, 0
        %906 = vmatprep.subr.mxu0 %v858
        %907 = vmatpush1.msra.mxu0 %v857
        %908 = vmatprep.subr.mxu0 %v862
        %909 = vmatpush1.msra.mxu0 %v861
        %910 = vmatprep.subr.mxu0 %v824
        %911 = vmatpush1.msra.mxu0 %v823
        %912 = vmatprep.subr.mxu0 %v828
        %913 = vmatpush1.msra.mxu0 %v827
        %914 = vmatprep.subr.mxu0 %v890
        %915 = vmatpush1.msra.mxu0 %v889
        %916 = vmatprep.subr.mxu0 %v894
        %917 = vmatpush1.msra.mxu0 %v893
        %918 = vmatprep.subr.mxu0 0.0
        %919 = vmatpush1.msra.mxu0 0.0
        %920 = vmatprep.subr.mxu0 0.0
        %921 = vmatpush1.msra.mxu0 0.0
        %922 = vmatprep.subr.mxu0 0.0
        %923 = vmatpush1.msra.mxu0 0.0
        %924 = vmatprep.subr.mxu0 0.0
        %925 = vmatpush1.msra.mxu0 0.0
        %926 = vmatprep.subr.mxu0 0.0
        %927 = vmatpush1.msra.mxu0 0.0
        %928 = vmatprep.subr.mxu0 0.0
        %929 = vmatpush1.msra.mxu0 0.0
        %930 = vmatprep.subr.mxu0 0.0
        %931 = vmatpush1.msra.mxu0 0.0
        %932 = vmatprep.subr.mxu0 0.0
        %933 = vmatpush1.msra.mxu0 0.0
        %934 = vmatprep.subr.mxu0 0.0
        %935 = vmatpush1.msra.mxu0 0.0
        %936 = vmatprep.subr.mxu0 0.0
        %937 = vmatpush1.msra.mxu0 0.0
        %938 = vmatprep.subr.mxu0 0.0
        %939 = vmatpush1.msra.mxu0 0.0
        %940 = vmatprep.subr.mxu0 0.0
        %941 = vmatpush1.msra.mxu0 0.0
        %942 = vmatprep.subr.mxu0 0.0
        %943 = vmatpush1.msra.mxu0 0.0
        %944 = vmatprep.subr.mxu0 0.0
        %945 = vmatpush1.msra.mxu0 0.0
        %946 = vmatprep.subr.mxu0 0.0
        %947 = vmatpush1.msra.mxu0 0.0
        %948 = vmatprep.subr.mxu0 0.0
        %949 = vmatpush1.msra.mxu0 0.0
        %950 = vmatprep.subr.mxu0 0.0
        %951 = vmatpush1.msra.mxu0 0.0
        %952 = vmatprep.subr.mxu0 0.0
        %953 = vmatpush1.msra.mxu0 0.0
        %954 = vmatprep.subr.mxu0 0.0
        %955 = vmatpush1.msra.mxu0 0.0
        %956 = vmatprep.subr.mxu0 0.0
        %957 = vmatpush1.msra.mxu0 0.0
        %958 = vmatprep.subr.mxu0 0.0
        %959 = vmatpush1.msra.mxu0 0.0
        %960 = vmatprep.subr.mxu0 0.0
        %961 = vmatpush1.msra.mxu0 0.0
        %962 = vmatprep.subr.mxu0 0.0
        %963 = vmatpush1.msra.mxu0 0.0
        %964 = vmatprep.subr.mxu0 0.0
        %965 = vmatpush1.msra.mxu0 0.0
        %966 = vmatprep.subr.mxu0 0.0
        %967 = vmatpush1.msra.mxu0 0.0
        %968 = vmatprep.subr.mxu0 0.0
        %969 = vmatpush1.msra.mxu0 0.0
        %970 = vmatprep.mubr.f32.mxu0 0.0
        %971 = vmatmul.mubr.f32.gmra.mrb[0].mxu0 %v904
        %v972 = vpop.f32.mrb[0].mxu0
        %v973 = vadd.f32 %v900, %v972
        %v974 = vpop.f32.mrb[0].mxu0
        %v975 = vadd.f32 %v900, %v974
        %976 = vdwg.mxu0
        %977 = vmatprep.subr.mxu0 %v860
        %978 = vmatpush1.msra.mxu0 %v859
        %979 = vmatprep.subr.mxu0 %v864
        %980 = vmatpush1.msra.mxu0 %v863
        %981 = vmatprep.subr.mxu0 %v826
        %982 = vmatpush1.msra.mxu0 %v825
        %983 = vmatprep.subr.mxu0 %v830
        %984 = vmatpush1.msra.mxu0 %v829
        %985 = vmatprep.subr.mxu0 %v892
        %986 = vmatpush1.msra.mxu0 %v891
        %987 = vmatprep.subr.mxu0 %v896
        %988 = vmatpush1.msra.mxu0 %v895
        %989 = vmatprep.subr.mxu0 0.0
        %990 = vmatpush1.msra.mxu0 0.0
        %991 = vmatprep.subr.mxu0 0.0
        %992 = vmatpush1.msra.mxu0 0.0
        %993 = vmatprep.subr.mxu0 0.0
        %994 = vmatpush1.msra.mxu0 0.0
        %995 = vmatprep.subr.mxu0 0.0
        %996 = vmatpush1.msra.mxu0 0.0
        %997 = vmatprep.subr.mxu0 0.0
        %998 = vmatpush1.msra.mxu0 0.0
        %999 = vmatprep.subr.mxu0 0.0
        %1000 = vmatpush1.msra.mxu0 0.0
        %1001 = vmatprep.subr.mxu0 0.0
        %1002 = vmatpush1.msra.mxu0 0.0
        %1003 = vmatprep.subr.mxu0 0.0
        %1004 = vmatpush1.msra.mxu0 0.0
        %1005 = vmatprep.subr.mxu0 0.0
        %1006 = vmatpush1.msra.mxu0 0.0
        %1007 = vmatprep.subr.mxu0 0.0
        %1008 = vmatpush1.msra.mxu0 0.0
        %1009 = vmatprep.subr.mxu0 0.0
        %1010 = vmatpush1.msra.mxu0 0.0
        %1011 = vmatprep.subr.mxu0 0.0
        %1012 = vmatpush1.msra.mxu0 0.0
        %1013 = vmatprep.subr.mxu0 0.0
        %1014 = vmatpush1.msra.mxu0 0.0
        %1015 = vmatprep.subr.mxu0 0.0
        %1016 = vmatpush1.msra.mxu0 0.0
        %1017 = vmatprep.subr.mxu0 0.0
        %1018 = vmatpush1.msra.mxu0 0.0
        %1019 = vmatprep.subr.mxu0 0.0
        %1020 = vmatpush1.msra.mxu0 0.0
        %1021 = vmatprep.subr.mxu0 0.0
        %1022 = vmatpush1.msra.mxu0 0.0
        %1023 = vmatprep.subr.mxu0 0.0
        %1024 = vmatpush1.msra.mxu0 0.0
        %1025 = vmatprep.subr.mxu0 0.0
        %1026 = vmatpush1.msra.mxu0 0.0
        %1027 = vmatprep.subr.mxu0 0.0
        %1028 = vmatpush1.msra.mxu0 0.0
        %1029 = vmatprep.subr.mxu0 0.0
        %1030 = vmatpush1.msra.mxu0 0.0
        %1031 = vmatprep.subr.mxu0 0.0
        %1032 = vmatpush1.msra.mxu0 0.0
        %1033 = vmatprep.subr.mxu0 0.0
        %1034 = vmatpush1.msra.mxu0 0.0
        %1035 = vmatprep.subr.mxu0 0.0
        %1036 = vmatpush1.msra.mxu0 0.0
        %1037 = vmatprep.subr.mxu0 0.0
        %1038 = vmatpush1.msra.mxu0 0.0
        %1039 = vmatprep.subr.mxu0 0.0
        %1040 = vmatpush1.msra.mxu0 0.0
        %1041 = vmatprep.mubr.f32.mxu0 0.0
        %1042 = vmatmul.mubr.f32.gmra.mrb[0].mxu0 %v904
        %v1043 = vpop.f32.mrb[0].mxu0
        %v1044 = vadd.f32 %v900, %v1043
        %v1045 = vpop.f32.mrb[0].mxu0
        %v1046 = vadd.f32 %v900, %v1045
        %1047 = vdwg.mxu0
        %v1048 = vmax.f32 %v973, 0.0
        %v1049 = vmax.f32 %v975, 0.0
        %v1050 = vmax.f32 %v1044, 0.0
        %v1051 = vmax.f32 %v1046, 0.0
        %v1052 = vld [vmem:[%s5] sm:$0xff]
        %v1053 = vld [vmem:[%s6] sm:$0xff]
        %1054 = vrot.lane.b32.xlu0 %v1048, 1
        %v1055 = vpop.permute.xlu0 %1054
        %1056 = vrot.lane.b32.xlu0 %v1049, 1
        %v1057 = vpop.permute.xlu0 %1056
        %1058 = vrot.lane.b32.xlu0 %v1050, 1
        %v1059 = vpop.permute.xlu0 %1058
        %1060 = vrot.lane.b32.xlu0 %v1051, 1
        %v1061 = vpop.permute.xlu0 %1060
        %v1062 = vsel %vm578, %v1059, %v1061
        %v1063 = vsel %vm578, %v1057, %v1059
        %v1064 = vsel %vm578, %v1055, %v1057
        %v1065 = vsel %vm578, %v1061, %v1055
        %v1066 = vmul.f32 %v1065, %v522
        %v1067 = vmul.f32 %v1064, %v523
        %v1068 = vmul.f32 %v1063, %v524
        %v1069 = vmul.f32 %v1062, %v525
        %1070 = vrot.lane.b32.xlu0 %v1048, 127
        %v1071 = vpop.permute.xlu0 %1070
        %1072 = vrot.lane.b32.xlu0 %v1049, 127
        %v1073 = vpop.permute.xlu0 %1072
        %1074 = vrot.lane.b32.xlu0 %v1050, 127
        %v1075 = vpop.permute.xlu0 %1074
        %1076 = vrot.lane.b32.xlu0 %v1051, 127
        %v1077 = vpop.permute.xlu0 %1076
        %v1078 = vsel %vm627, %v1075, %v1077
        %v1079 = vsel %vm627, %v1073, %v1075
        %v1080 = vsel %vm627, %v1071, %v1073
        %v1081 = vsel %vm627, %v1077, %v1071
        %v1082 = vmul.f32 %v1080, %v534
        %v1083 = vmul.f32 %v1079, %v535
        %v1084 = vmul.f32 %v1078, %v536
        %v1085 = vmul.f32 %v1081, %v537
        %1087 = vset.pattern.permute.xlu0 0
        %1088 = vperm.xlu0 %1087, %v1053
        %v1089 = vpop.permute.xlu0 %1088
        %vm1091 = vcmask 195584
        %v1093 = vsel %vm1091, %v1052, 0
        %1095 = vmatprep.subr.mxu0 %v1067
        %1096 = vmatpush1.msra.mxu0 %v1066
        %1097 = vmatprep.subr.mxu0 %v1049
        %1098 = vmatpush1.msra.mxu0 %v1048
        %1099 = vmatprep.subr.mxu0 %v1083
        %1100 = vmatpush1.msra.mxu0 %v1082
        %1101 = vmatprep.subr.mxu0 0.0
        %1102 = vmatpush1.msra.mxu0 0.0
        %1103 = vmatprep.subr.mxu0 0.0
        %1104 = vmatpush1.msra.mxu0 0.0
        %1105 = vmatprep.subr.mxu0 0.0
        %1106 = vmatpush1.msra.mxu0 0.0
        %1107 = vmatprep.subr.mxu0 0.0
        %1108 = vmatpush1.msra.mxu0 0.0
        %1109 = vmatprep.subr.mxu0 0.0
        %1110 = vmatpush1.msra.mxu0 0.0
        %1111 = vmatprep.subr.mxu0 0.0
        %1112 = vmatpush1.msra.mxu0 0.0
        %1113 = vmatprep.subr.mxu0 0.0
        %1114 = vmatpush1.msra.mxu0 0.0
        %1115 = vmatprep.subr.mxu0 0.0
        %1116 = vmatpush1.msra.mxu0 0.0
        %1117 = vmatprep.subr.mxu0 0.0
        %1118 = vmatpush1.msra.mxu0 0.0
        %1119 = vmatprep.subr.mxu0 0.0
        %1120 = vmatpush1.msra.mxu0 0.0
        %1121 = vmatprep.subr.mxu0 0.0
        %1122 = vmatpush1.msra.mxu0 0.0
        %1123 = vmatprep.subr.mxu0 0.0
        %1124 = vmatpush1.msra.mxu0 0.0
        %1125 = vmatprep.subr.mxu0 0.0
        %1126 = vmatpush1.msra.mxu0 0.0
        %1127 = vmatprep.subr.mxu0 0.0
        %1128 = vmatpush1.msra.mxu0 0.0
        %1129 = vmatprep.subr.mxu0 0.0
        %1130 = vmatpush1.msra.mxu0 0.0
        %1131 = vmatprep.subr.mxu0 0.0
        %1132 = vmatpush1.msra.mxu0 0.0
        %1133 = vmatprep.subr.mxu0 0.0
        %1134 = vmatpush1.msra.mxu0 0.0
        %1135 = vmatprep.subr.mxu0 0.0
        %1136 = vmatpush1.msra.mxu0 0.0
        %1137 = vmatprep.subr.mxu0 0.0
        %1138 = vmatpush1.msra.mxu0 0.0
        %1139 = vmatprep.subr.mxu0 0.0
        %1140 = vmatpush1.msra.mxu0 0.0
        %1141 = vmatprep.subr.mxu0 0.0
        %1142 = vmatpush1.msra.mxu0 0.0
        %1143 = vmatprep.subr.mxu0 0.0
        %1144 = vmatpush1.msra.mxu0 0.0
        %1145 = vmatprep.subr.mxu0 0.0
        %1146 = vmatpush1.msra.mxu0 0.0
        %1147 = vmatprep.subr.mxu0 0.0
        %1148 = vmatpush1.msra.mxu0 0.0
        %1149 = vmatprep.subr.mxu0 0.0
        %1150 = vmatpush1.msra.mxu0 0.0
        %1151 = vmatprep.subr.mxu0 0.0
        %1152 = vmatpush1.msra.mxu0 0.0
        %1153 = vmatprep.subr.mxu0 0.0
        %1154 = vmatpush1.msra.mxu0 0.0
        %1155 = vmatprep.subr.mxu0 0.0
        %1156 = vmatpush1.msra.mxu0 0.0
        %1157 = vmatprep.subr.mxu0 0.0
        %1158 = vmatpush1.msra.mxu0 0.0
        %1159 = vmatprep.mubr.f32.mxu0 0.0
        %1160 = vmatmul.mubr.f32.gmra.mrb[0].mxu0 %v1093
        %v1161 = vpop.f32.mrb[0].mxu0
        %v1162 = vadd.f32 %v1089, %v1161
        %v1163 = vpop.f32.mrb[0].mxu0
        %v1164 = vadd.f32 %v1089, %v1163
        %1165 = vdwg.mxu0
        %1166 = vmatprep.subr.mxu0 %v1069
        %1167 = vmatpush1.msra.mxu0 %v1068
        %1168 = vmatprep.subr.mxu0 %v1051
        %1169 = vmatpush1.msra.mxu0 %v1050
        %1170 = vmatprep.subr.mxu0 %v1085
        %1171 = vmatpush1.msra.mxu0 %v1084
        %1172 = vmatprep.subr.mxu0 0.0
        %1173 = vmatpush1.msra.mxu0 0.0
        %1174 = vmatprep.subr.mxu0 0.0
        %1175 = vmatpush1.msra.mxu0 0.0
        %1176 = vmatprep.subr.mxu0 0.0
        %1177 = vmatpush1.msra.mxu0 0.0
        %1178 = vmatprep.subr.mxu0 0.0
        %1179 = vmatpush1.msra.mxu0 0.0
        %1180 = vmatprep.subr.mxu0 0.0
        %1181 = vmatpush1.msra.mxu0 0.0
        %1182 = vmatprep.subr.mxu0 0.0
        %1183 = vmatpush1.msra.mxu0 0.0
        %1184 = vmatprep.subr.mxu0 0.0
        %1185 = vmatpush1.msra.mxu0 0.0
        %1186 = vmatprep.subr.mxu0 0.0
        %1187 = vmatpush1.msra.mxu0 0.0
        %1188 = vmatprep.subr.mxu0 0.0
        %1189 = vmatpush1.msra.mxu0 0.0
        %1190 = vmatprep.subr.mxu0 0.0
        %1191 = vmatpush1.msra.mxu0 0.0
        %1192 = vmatprep.subr.mxu0 0.0
        %1193 = vmatpush1.msra.mxu0 0.0
        %1194 = vmatprep.subr.mxu0 0.0
        %1195 = vmatpush1.msra.mxu0 0.0
        %1196 = vmatprep.subr.mxu0 0.0
        %1197 = vmatpush1.msra.mxu0 0.0
        %1198 = vmatprep.subr.mxu0 0.0
        %1199 = vmatpush1.msra.mxu0 0.0
        %1200 = vmatprep.subr.mxu0 0.0
        %1201 = vmatpush1.msra.mxu0 0.0
        %1202 = vmatprep.subr.mxu0 0.0
        %1203 = vmatpush1.msra.mxu0 0.0
        %1204 = vmatprep.subr.mxu0 0.0
        %1205 = vmatpush1.msra.mxu0 0.0
        %1206 = vmatprep.subr.mxu0 0.0
        %1207 = vmatpush1.msra.mxu0 0.0
        %1208 = vmatprep.subr.mxu0 0.0
        %1209 = vmatpush1.msra.mxu0 0.0
        %1210 = vmatprep.subr.mxu0 0.0
        %1211 = vmatpush1.msra.mxu0 0.0
        %1212 = vmatprep.subr.mxu0 0.0
        %1213 = vmatpush1.msra.mxu0 0.0
        %1214 = vmatprep.subr.mxu0 0.0
        %1215 = vmatpush1.msra.mxu0 0.0
        %1216 = vmatprep.subr.mxu0 0.0
        %1217 = vmatpush1.msra.mxu0 0.0
        %1218 = vmatprep.subr.mxu0 0.0
        %1219 = vmatpush1.msra.mxu0 0.0
        %1220 = vmatprep.subr.mxu0 0.0
        %1221 = vmatpush1.msra.mxu0 0.0
        %1222 = vmatprep.subr.mxu0 0.0
        %1223 = vmatpush1.msra.mxu0 0.0
        %1224 = vmatprep.subr.mxu0 0.0
        %1225 = vmatpush1.msra.mxu0 0.0
        %1226 = vmatprep.subr.mxu0 0.0
        %1227 = vmatpush1.msra.mxu0 0.0
        %1228 = vmatprep.subr.mxu0 0.0
        %1229 = vmatpush1.msra.mxu0 0.0
        %1230 = vmatprep.mubr.f32.mxu0 0.0
        %1231 = vmatmul.mubr.f32.gmra.mrb[0].mxu0 %v1093
        %v1232 = vpop.f32.mrb[0].mxu0
        %v1233 = vadd.f32 %v1089, %v1232
        %v1234 = vpop.f32.mrb[0].mxu0
        %v1235 = vadd.f32 %v1089, %v1234
        %1236 = vdwg.mxu0
        %v1237 = vmax.f32 %v1162, 0.0
        %v1238 = vmax.f32 %v1164, 0.0
        %v1239 = vmax.f32 %v1233, 0.0
        %v1240 = vmax.f32 %v1235, 0.0
        %v1241 = vld [vmem:[%s7] sm:$0xff]
        %v1242 = vld [vmem:[%s8] sm:$0xff]
        %1243 = vrot.lane.b32.xlu0 %v1237, 1
        %v1244 = vpop.permute.xlu0 %1243
        %1245 = vrot.lane.b32.xlu0 %v1238, 1
        %v1246 = vpop.permute.xlu0 %1245
        %1247 = vrot.lane.b32.xlu0 %v1239, 1
        %v1248 = vpop.permute.xlu0 %1247
        %1249 = vrot.lane.b32.xlu0 %v1240, 1
        %v1250 = vpop.permute.xlu0 %1249
        %v1251 = vsel %vm578, %v1248, %v1250
        %v1252 = vsel %vm578, %v1246, %v1248
        %v1253 = vsel %vm578, %v1244, %v1246
        %v1254 = vsel %vm578, %v1250, %v1244
        %v1255 = vmul.f32 %v1254, %v522
        %v1256 = vmul.f32 %v1253, %v523
        %v1257 = vmul.f32 %v1252, %v524
        %v1258 = vmul.f32 %v1251, %v525
        %1259 = vrot.lane.b32.xlu0 %v1237, 127
        %v1260 = vpop.permute.xlu0 %1259
        %1261 = vrot.lane.b32.xlu0 %v1238, 127
        %v1262 = vpop.permute.xlu0 %1261
        %1263 = vrot.lane.b32.xlu0 %v1239, 127
        %v1264 = vpop.permute.xlu0 %1263
        %1265 = vrot.lane.b32.xlu0 %v1240, 127
        %v1266 = vpop.permute.xlu0 %1265
        %v1267 = vsel %vm627, %v1264, %v1266
        %v1268 = vsel %vm627, %v1262, %v1264
        %v1269 = vsel %vm627, %v1260, %v1262
        %v1270 = vsel %vm627, %v1266, %v1260
        %v1271 = vmul.f32 %v1269, %v534
        %v1272 = vmul.f32 %v1268, %v535
        %v1273 = vmul.f32 %v1267, %v536
        %v1274 = vmul.f32 %v1270, %v537
        %1276 = vset.pattern.permute.xlu0 0
        %1277 = vperm.xlu0 %1276, %v1242
        %v1278 = vpop.permute.xlu0 %1277
        %v1281 = vsel %vm1091, %v1241, 0
        %1283 = vmatprep.subr.mxu0 %v1256
        %1284 = vmatpush1.msra.mxu0 %v1255
        %1285 = vmatprep.subr.mxu0 %v1238
        %1286 = vmatpush1.msra.mxu0 %v1237
        %1287 = vmatprep.subr.mxu0 %v1272
        %1288 = vmatpush1.msra.mxu0 %v1271
        %1289 = vmatprep.subr.mxu0 0.0
        %1290 = vmatpush1.msra.mxu0 0.0
        %1291 = vmatprep.subr.mxu0 0.0
        %1292 = vmatpush1.msra.mxu0 0.0
        %1293 = vmatprep.subr.mxu0 0.0
        %1294 = vmatpush1.msra.mxu0 0.0
        %1295 = vmatprep.subr.mxu0 0.0
        %1296 = vmatpush1.msra.mxu0 0.0
        %1297 = vmatprep.subr.mxu0 0.0
        %1298 = vmatpush1.msra.mxu0 0.0
        %1299 = vmatprep.subr.mxu0 0.0
        %1300 = vmatpush1.msra.mxu0 0.0
        %1301 = vmatprep.subr.mxu0 0.0
        %1302 = vmatpush1.msra.mxu0 0.0
        %1303 = vmatprep.subr.mxu0 0.0
        %1304 = vmatpush1.msra.mxu0 0.0
        %1305 = vmatprep.subr.mxu0 0.0
        %1306 = vmatpush1.msra.mxu0 0.0
        %1307 = vmatprep.subr.mxu0 0.0
        %1308 = vmatpush1.msra.mxu0 0.0
        %1309 = vmatprep.subr.mxu0 0.0
        %1310 = vmatpush1.msra.mxu0 0.0
        %1311 = vmatprep.subr.mxu0 0.0
        %1312 = vmatpush1.msra.mxu0 0.0
        %1313 = vmatprep.subr.mxu0 0.0
        %1314 = vmatpush1.msra.mxu0 0.0
        %1315 = vmatprep.subr.mxu0 0.0
        %1316 = vmatpush1.msra.mxu0 0.0
        %1317 = vmatprep.subr.mxu0 0.0
        %1318 = vmatpush1.msra.mxu0 0.0
        %1319 = vmatprep.subr.mxu0 0.0
        %1320 = vmatpush1.msra.mxu0 0.0
        %1321 = vmatprep.subr.mxu0 0.0
        %1322 = vmatpush1.msra.mxu0 0.0
        %1323 = vmatprep.subr.mxu0 0.0
        %1324 = vmatpush1.msra.mxu0 0.0
        %1325 = vmatprep.subr.mxu0 0.0
        %1326 = vmatpush1.msra.mxu0 0.0
        %1327 = vmatprep.subr.mxu0 0.0
        %1328 = vmatpush1.msra.mxu0 0.0
        %1329 = vmatprep.subr.mxu0 0.0
        %1330 = vmatpush1.msra.mxu0 0.0
        %1331 = vmatprep.subr.mxu0 0.0
        %1332 = vmatpush1.msra.mxu0 0.0
        %1333 = vmatprep.subr.mxu0 0.0
        %1334 = vmatpush1.msra.mxu0 0.0
        %1335 = vmatprep.subr.mxu0 0.0
        %1336 = vmatpush1.msra.mxu0 0.0
        %1337 = vmatprep.subr.mxu0 0.0
        %1338 = vmatpush1.msra.mxu0 0.0
        %1339 = vmatprep.subr.mxu0 0.0
        %1340 = vmatpush1.msra.mxu0 0.0
        %1341 = vmatprep.subr.mxu0 0.0
        %1342 = vmatpush1.msra.mxu0 0.0
        %1343 = vmatprep.subr.mxu0 0.0
        %1344 = vmatpush1.msra.mxu0 0.0
        %1345 = vmatprep.subr.mxu0 0.0
        %1346 = vmatpush1.msra.mxu0 0.0
        %1347 = vmatprep.mubr.f32.mxu0 0.0
        %1348 = vmatmul.mubr.f32.gmra.mrb[0].mxu0 %v1281
        %v1349 = vpop.f32.mrb[0].mxu0
        %v1350 = vadd.f32 %v1278, %v1349
        %v1351 = vpop.f32.mrb[0].mxu0
        %v1352 = vadd.f32 %v1278, %v1351
        %1353 = vdwg.mxu0
        %1354 = vmatprep.subr.mxu0 %v1258
        %1355 = vmatpush1.msra.mxu0 %v1257
        %1356 = vmatprep.subr.mxu0 %v1240
        %1357 = vmatpush1.msra.mxu0 %v1239
        %1358 = vmatprep.subr.mxu0 %v1274
        %1359 = vmatpush1.msra.mxu0 %v1273
        %1360 = vmatprep.subr.mxu0 0.0
        %1361 = vmatpush1.msra.mxu0 0.0
        %1362 = vmatprep.subr.mxu0 0.0
        %1363 = vmatpush1.msra.mxu0 0.0
        %1364 = vmatprep.subr.mxu0 0.0
        %1365 = vmatpush1.msra.mxu0 0.0
        %1366 = vmatprep.subr.mxu0 0.0
        %1367 = vmatpush1.msra.mxu0 0.0
        %1368 = vmatprep.subr.mxu0 0.0
        %1369 = vmatpush1.msra.mxu0 0.0
        %1370 = vmatprep.subr.mxu0 0.0
        %1371 = vmatpush1.msra.mxu0 0.0
        %1372 = vmatprep.subr.mxu0 0.0
        %1373 = vmatpush1.msra.mxu0 0.0
        %1374 = vmatprep.subr.mxu0 0.0
        %1375 = vmatpush1.msra.mxu0 0.0
        %1376 = vmatprep.subr.mxu0 0.0
        %1377 = vmatpush1.msra.mxu0 0.0
        %1378 = vmatprep.subr.mxu0 0.0
        %1379 = vmatpush1.msra.mxu0 0.0
        %1380 = vmatprep.subr.mxu0 0.0
        %1381 = vmatpush1.msra.mxu0 0.0
        %1382 = vmatprep.subr.mxu0 0.0
        %1383 = vmatpush1.msra.mxu0 0.0
        %1384 = vmatprep.subr.mxu0 0.0
        %1385 = vmatpush1.msra.mxu0 0.0
        %1386 = vmatprep.subr.mxu0 0.0
        %1387 = vmatpush1.msra.mxu0 0.0
        %1388 = vmatprep.subr.mxu0 0.0
        %1389 = vmatpush1.msra.mxu0 0.0
        %1390 = vmatprep.subr.mxu0 0.0
        %1391 = vmatpush1.msra.mxu0 0.0
        %1392 = vmatprep.subr.mxu0 0.0
        %1393 = vmatpush1.msra.mxu0 0.0
        %1394 = vmatprep.subr.mxu0 0.0
        %1395 = vmatpush1.msra.mxu0 0.0
        %1396 = vmatprep.subr.mxu0 0.0
        %1397 = vmatpush1.msra.mxu0 0.0
        %1398 = vmatprep.subr.mxu0 0.0
        %1399 = vmatpush1.msra.mxu0 0.0
        %1400 = vmatprep.subr.mxu0 0.0
        %1401 = vmatpush1.msra.mxu0 0.0
        %1402 = vmatprep.subr.mxu0 0.0
        %1403 = vmatpush1.msra.mxu0 0.0
        %1404 = vmatprep.subr.mxu0 0.0
        %1405 = vmatpush1.msra.mxu0 0.0
        %1406 = vmatprep.subr.mxu0 0.0
        %1407 = vmatpush1.msra.mxu0 0.0
        %1408 = vmatprep.subr.mxu0 0.0
        %1409 = vmatpush1.msra.mxu0 0.0
        %1410 = vmatprep.subr.mxu0 0.0
        %1411 = vmatpush1.msra.mxu0 0.0
        %1412 = vmatprep.subr.mxu0 0.0
        %1413 = vmatpush1.msra.mxu0 0.0
        %1414 = vmatprep.subr.mxu0 0.0
        %1415 = vmatpush1.msra.mxu0 0.0
        %1416 = vmatprep.subr.mxu0 0.0
        %1417 = vmatpush1.msra.mxu0 0.0
        %1418 = vmatprep.mubr.f32.mxu0 0.0
        %1419 = vmatmul.mubr.f32.gmra.mrb[0].mxu0 %v1281
        %v1420 = vpop.f32.mrb[0].mxu0
        %v1421 = vadd.f32 %v1278, %v1420
        %v1422 = vpop.f32.mrb[0].mxu0
        %v1423 = vadd.f32 %v1278, %v1422
        %1424 = vdwg.mxu0
        %v1425 = vmax.f32 %v1350, 0.0
        %v1426 = vmax.f32 %v1352, 0.0
        %v1427 = vmax.f32 %v1421, 0.0
        %v1428 = vmax.f32 %v1423, 0.0
        %v1429 = vld [vmem:[%s9] sm:$0xff]
        %v1430 = vld [vmem:[%s9 + $0x8] sm:$0xff]
        %v1431 = vld [vmem:[%s10] sm:$0xff]
        %v1432 = vld [vmem:[%s10 + $0x8] sm:$0xff]
        %1433 = vrot.lane.b32.xlu0 %v1425, 1
        %v1434 = vpop.permute.xlu0 %1433
        %1435 = vrot.lane.b32.xlu0 %v1426, 1
        %v1436 = vpop.permute.xlu0 %1435
        %1437 = vrot.lane.b32.xlu0 %v1427, 1
        %v1438 = vpop.permute.xlu0 %1437
        %1439 = vrot.lane.b32.xlu0 %v1428, 1
        %v1440 = vpop.permute.xlu0 %1439
        %v1441 = vsel %vm578, %v1438, %v1440
        %v1442 = vsel %vm578, %v1436, %v1438
        %v1443 = vsel %vm578, %v1434, %v1436
        %v1444 = vsel %vm578, %v1440, %v1434
        %v1445 = vmul.f32 %v1444, %v522
        %v1446 = vmul.f32 %v1443, %v523
        %v1447 = vmul.f32 %v1442, %v524
        %v1448 = vmul.f32 %v1441, %v525
        %1449 = vrot.lane.b32.xlu0 %v1425, 127
        %v1450 = vpop.permute.xlu0 %1449
        %1451 = vrot.lane.b32.xlu0 %v1426, 127
        %v1452 = vpop.permute.xlu0 %1451
        %1453 = vrot.lane.b32.xlu0 %v1427, 127
        %v1454 = vpop.permute.xlu0 %1453
        %1455 = vrot.lane.b32.xlu0 %v1428, 127
        %v1456 = vpop.permute.xlu0 %1455
        %v1457 = vsel %vm627, %v1454, %v1456
        %v1458 = vsel %vm627, %v1452, %v1454
        %v1459 = vsel %vm627, %v1450, %v1452
        %v1460 = vsel %vm627, %v1456, %v1450
        %v1461 = vmul.f32 %v1459, %v534
        %v1462 = vmul.f32 %v1458, %v535
        %v1463 = vmul.f32 %v1457, %v536
        %v1464 = vmul.f32 %v1460, %v537
        %1466 = vset.pattern.permute.xlu0 0
        %1467 = vperm.xlu0 %1466, %v1431
        %v1468 = vpop.permute.xlu0 %1467
        %1471 = vset.pattern.permute.xlu0 0
        %1472 = vperm.xlu0 %1471, %v1432
        %v1473 = vpop.permute.xlu0 %1472
        %v1476 = vsel %vm1091, %v1429, 0
        %v1479 = vsel %vm1091, %v1430, 0
        %1481 = vmatprep.subr.mxu0 %v1446
        %1482 = vmatpush1.msra.mxu0 %v1445
        %1483 = vmatprep.subr.mxu0 %v1426
        %1484 = vmatpush1.msra.mxu0 %v1425
        %1485 = vmatprep.subr.mxu0 %v1462
        %1486 = vmatpush1.msra.mxu0 %v1461
        %1487 = vmatprep.subr.mxu0 0.0
        %1488 = vmatpush1.msra.mxu0 0.0
        %1489 = vmatprep.subr.mxu0 0.0
        %1490 = vmatpush1.msra.mxu0 0.0
        %1491 = vmatprep.subr.mxu0 0.0
        %1492 = vmatpush1.msra.mxu0 0.0
        %1493 = vmatprep.subr.mxu0 0.0
        %1494 = vmatpush1.msra.mxu0 0.0
        %1495 = vmatprep.subr.mxu0 0.0
        %1496 = vmatpush1.msra.mxu0 0.0
        %1497 = vmatprep.subr.mxu0 0.0
        %1498 = vmatpush1.msra.mxu0 0.0
        %1499 = vmatprep.subr.mxu0 0.0
        %1500 = vmatpush1.msra.mxu0 0.0
        %1501 = vmatprep.subr.mxu0 0.0
        %1502 = vmatpush1.msra.mxu0 0.0
        %1503 = vmatprep.subr.mxu0 0.0
        %1504 = vmatpush1.msra.mxu0 0.0
        %1505 = vmatprep.subr.mxu0 0.0
        %1506 = vmatpush1.msra.mxu0 0.0
        %1507 = vmatprep.subr.mxu0 0.0
        %1508 = vmatpush1.msra.mxu0 0.0
        %1509 = vmatprep.subr.mxu0 0.0
        %1510 = vmatpush1.msra.mxu0 0.0
        %1511 = vmatprep.subr.mxu0 0.0
        %1512 = vmatpush1.msra.mxu0 0.0
        %1513 = vmatprep.subr.mxu0 0.0
        %1514 = vmatpush1.msra.mxu0 0.0
        %1515 = vmatprep.subr.mxu0 0.0
        %1516 = vmatpush1.msra.mxu0 0.0
        %1517 = vmatprep.subr.mxu0 0.0
        %1518 = vmatpush1.msra.mxu0 0.0
        %1519 = vmatprep.subr.mxu0 0.0
        %1520 = vmatpush1.msra.mxu0 0.0
        %1521 = vmatprep.subr.mxu0 0.0
        %1522 = vmatpush1.msra.mxu0 0.0
        %1523 = vmatprep.subr.mxu0 0.0
        %1524 = vmatpush1.msra.mxu0 0.0
        %1525 = vmatprep.subr.mxu0 0.0
        %1526 = vmatpush1.msra.mxu0 0.0
        %1527 = vmatprep.subr.mxu0 0.0
        %1528 = vmatpush1.msra.mxu0 0.0
        %1529 = vmatprep.subr.mxu0 0.0
        %1530 = vmatpush1.msra.mxu0 0.0
        %1531 = vmatprep.subr.mxu0 0.0
        %1532 = vmatpush1.msra.mxu0 0.0
        %1533 = vmatprep.subr.mxu0 0.0
        %1534 = vmatpush1.msra.mxu0 0.0
        %1535 = vmatprep.subr.mxu0 0.0
        %1536 = vmatpush1.msra.mxu0 0.0
        %1537 = vmatprep.subr.mxu0 0.0
        %1538 = vmatpush1.msra.mxu0 0.0
        %1539 = vmatprep.subr.mxu0 0.0
        %1540 = vmatpush1.msra.mxu0 0.0
        %1541 = vmatprep.subr.mxu0 0.0
        %1542 = vmatpush1.msra.mxu0 0.0
        %1543 = vmatprep.subr.mxu0 0.0
        %1544 = vmatpush1.msra.mxu0 0.0
        %1545 = vmatprep.mubr.f32.mxu0 0.0
        %1546 = vmatmul.mubr.f32.gmra.mrb[0].mxu0 %v1476
        %v1547 = vpop.f32.mrb[0].mxu0
        %v1548 = vadd.f32 %v1468, %v1547
        %v1549 = vpop.f32.mrb[0].mxu0
        %v1550 = vadd.f32 %v1468, %v1549
        %1551 = vmatprep.mubr.f32.mxu0 0.0
        %1552 = vmatmul.mubr.f32.gmra.mrb[0].mxu0 %v1479
        %v1553 = vpop.f32.mrb[0].mxu0
        %v1554 = vadd.f32 %v1473, %v1553
        %v1555 = vpop.f32.mrb[0].mxu0
        %v1556 = vadd.f32 %v1473, %v1555
        %1557 = vdwg.mxu0
        %1558 = vmatprep.subr.mxu0 %v1448
        %1559 = vmatpush1.msra.mxu0 %v1447
        %1560 = vmatprep.subr.mxu0 %v1428
        %1561 = vmatpush1.msra.mxu0 %v1427
        %1562 = vmatprep.subr.mxu0 %v1464
        %1563 = vmatpush1.msra.mxu0 %v1463
        %1564 = vmatprep.subr.mxu0 0.0
        %1565 = vmatpush1.msra.mxu0 0.0
        %1566 = vmatprep.subr.mxu0 0.0
        %1567 = vmatpush1.msra.mxu0 0.0
        %1568 = vmatprep.subr.mxu0 0.0
        %1569 = vmatpush1.msra.mxu0 0.0
        %1570 = vmatprep.subr.mxu0 0.0
        %1571 = vmatpush1.msra.mxu0 0.0
        %1572 = vmatprep.subr.mxu0 0.0
        %1573 = vmatpush1.msra.mxu0 0.0
        %1574 = vmatprep.subr.mxu0 0.0
        %1575 = vmatpush1.msra.mxu0 0.0
        %1576 = vmatprep.subr.mxu0 0.0
        %1577 = vmatpush1.msra.mxu0 0.0
        %1578 = vmatprep.subr.mxu0 0.0
        %1579 = vmatpush1.msra.mxu0 0.0
        %1580 = vmatprep.subr.mxu0 0.0
        %1581 = vmatpush1.msra.mxu0 0.0
        %1582 = vmatprep.subr.mxu0 0.0
        %1583 = vmatpush1.msra.mxu0 0.0
        %1584 = vmatprep.subr.mxu0 0.0
        %1585 = vmatpush1.msra.mxu0 0.0
        %1586 = vmatprep.subr.mxu0 0.0
        %1587 = vmatpush1.msra.mxu0 0.0
        %1588 = vmatprep.subr.mxu0 0.0
        %1589 = vmatpush1.msra.mxu0 0.0
        %1590 = vmatprep.subr.mxu0 0.0
        %1591 = vmatpush1.msra.mxu0 0.0
        %1592 = vmatprep.subr.mxu0 0.0
        %1593 = vmatpush1.msra.mxu0 0.0
        %1594 = vmatprep.subr.mxu0 0.0
        %1595 = vmatpush1.msra.mxu0 0.0
        %1596 = vmatprep.subr.mxu0 0.0
        %1597 = vmatpush1.msra.mxu0 0.0
        %1598 = vmatprep.subr.mxu0 0.0
        %1599 = vmatpush1.msra.mxu0 0.0
        %1600 = vmatprep.subr.mxu0 0.0
        %1601 = vmatpush1.msra.mxu0 0.0
        %1602 = vmatprep.subr.mxu0 0.0
        %1603 = vmatpush1.msra.mxu0 0.0
        %1604 = vmatprep.subr.mxu0 0.0
        %1605 = vmatpush1.msra.mxu0 0.0
        %1606 = vmatprep.subr.mxu0 0.0
        %1607 = vmatpush1.msra.mxu0 0.0
        %1608 = vmatprep.subr.mxu0 0.0
        %1609 = vmatpush1.msra.mxu0 0.0
        %1610 = vmatprep.subr.mxu0 0.0
        %1611 = vmatpush1.msra.mxu0 0.0
        %1612 = vmatprep.subr.mxu0 0.0
        %1613 = vmatpush1.msra.mxu0 0.0
        %1614 = vmatprep.subr.mxu0 0.0
        %1615 = vmatpush1.msra.mxu0 0.0
        %1616 = vmatprep.subr.mxu0 0.0
        %1617 = vmatpush1.msra.mxu0 0.0
        %1618 = vmatprep.subr.mxu0 0.0
        %1619 = vmatpush1.msra.mxu0 0.0
        %1620 = vmatprep.subr.mxu0 0.0
        %1621 = vmatpush1.msra.mxu0 0.0
        %1622 = vmatprep.mubr.f32.mxu0 0.0
        %1623 = vmatmul.mubr.f32.gmra.mrb[0].mxu0 %v1476
        %v1624 = vpop.f32.mrb[0].mxu0
        %v1625 = vadd.f32 %v1468, %v1624
        %v1626 = vpop.f32.mrb[0].mxu0
        %v1627 = vadd.f32 %v1468, %v1626
        %1628 = vmatprep.mubr.f32.mxu0 0.0
        %1629 = vmatmul.mubr.f32.gmra.mrb[0].mxu0 %v1479
        %v1630 = vpop.f32.mrb[0].mxu0
        %v1631 = vadd.f32 %v1473, %v1630
        %v1632 = vpop.f32.mrb[0].mxu0
        %v1633 = vadd.f32 %v1473, %v1632
        %1634 = vdwg.mxu0
        %v1635 = vmax.f32 %v1548, 0.0
        %v1636 = vmax.f32 %v1550, 0.0
        %v1637 = vmax.f32 %v1625, 0.0
        %v1638 = vmax.f32 %v1627, 0.0
        %v1639 = vmax.f32 %v1554, 0.0
        %v1640 = vmax.f32 %v1556, 0.0
        %v1641 = vmax.f32 %v1631, 0.0
        %v1642 = vmax.f32 %v1633, 0.0
        %v1643 = vld [vmem:[%s11] sm:$0xff]
        %v1644 = vld [vmem:[%s11 + $0x8] sm:$0xff]
        %v1645 = vld [vmem:[%s11 + $0x10] sm:$0xff]
        %v1646 = vld [vmem:[%s12] sm:$0xff]
        %v1647 = vld [vmem:[%s12 + $0x8] sm:$0xff]
        %v1648 = vld [vmem:[%s12 + $0x10] sm:$0xff]
        %1649 = vrot.lane.b32.xlu0 %v1635, 1
        %v1650 = vpop.permute.xlu0 %1649
        %1651 = vrot.lane.b32.xlu0 %v1639, 1
        %v1652 = vpop.permute.xlu0 %1651
        %1653 = vrot.lane.b32.xlu0 %v1636, 1
        %v1654 = vpop.permute.xlu0 %1653
        %1655 = vrot.lane.b32.xlu0 %v1640, 1
        %v1656 = vpop.permute.xlu0 %1655
        %1657 = vrot.lane.b32.xlu0 %v1637, 1
        %v1658 = vpop.permute.xlu0 %1657
        %1659 = vrot.lane.b32.xlu0 %v1641, 1
        %v1660 = vpop.permute.xlu0 %1659
        %1661 = vrot.lane.b32.xlu0 %v1638, 1
        %v1662 = vpop.permute.xlu0 %1661
        %1663 = vrot.lane.b32.xlu0 %v1642, 1
        %v1664 = vpop.permute.xlu0 %1663
        %v1665 = vsel %vm578, %v1658, %v1662
        %v1666 = vsel %vm578, %v1660, %v1664
        %v1667 = vsel %vm578, %v1654, %v1658
        %v1668 = vsel %vm578, %v1656, %v1660
        %v1669 = vsel %vm578, %v1650, %v1654
        %v1670 = vsel %vm578, %v1652, %v1656
        %v1671 = vsel %vm578, %v1662, %v1650
        %v1672 = vsel %vm578, %v1664, %v1652
        %v1673 = vmul.f32 %v1671, %v522
        %v1674 = vmul.f32 %v1669, %v523
        %v1675 = vmul.f32 %v1667, %v524
        %v1676 = vmul.f32 %v1665, %v525
        %v1677 = vmul.f32 %v1672, %v522
        %v1678 = vmul.f32 %v1670, %v523
        %v1679 = vmul.f32 %v1668, %v524
        %v1680 = vmul.f32 %v1666, %v525
        %1681 = vrot.lane.b32.xlu0 %v1635, 127
        %v1682 = vpop.permute.xlu0 %1681
        %1683 = vrot.lane.b32.xlu0 %v1639, 127
        %v1684 = vpop.permute.xlu0 %1683
        %1685 = vrot.lane.b32.xlu0 %v1636, 127
        %v1686 = vpop.permute.xlu0 %1685
        %1687 = vrot.lane.b32.xlu0 %v1640, 127
        %v1688 = vpop.permute.xlu0 %1687
        %1689 = vrot.lane.b32.xlu0 %v1637, 127
        %v1690 = vpop.permute.xlu0 %1689
        %1691 = vrot.lane.b32.xlu0 %v1641, 127
        %v1692 = vpop.permute.xlu0 %1691
        %1693 = vrot.lane.b32.xlu0 %v1638, 127
        %v1694 = vpop.permute.xlu0 %1693
        %1695 = vrot.lane.b32.xlu0 %v1642, 127
        %v1696 = vpop.permute.xlu0 %1695
        %v1697 = vsel %vm627, %v1690, %v1694
        %v1698 = vsel %vm627, %v1692, %v1696
        %v1699 = vsel %vm627, %v1686, %v1690
        %v1700 = vsel %vm627, %v1688, %v1692
        %v1701 = vsel %vm627, %v1682, %v1686
        %v1702 = vsel %vm627, %v1684, %v1688
        %v1703 = vsel %vm627, %v1694, %v1682
        %v1704 = vsel %vm627, %v1696, %v1684
        %v1705 = vmul.f32 %v1701, %v534
        %v1706 = vmul.f32 %v1699, %v535
        %v1707 = vmul.f32 %v1697, %v536
        %v1708 = vmul.f32 %v1703, %v537
        %v1709 = vmul.f32 %v1702, %v534
        %v1710 = vmul.f32 %v1700, %v535
        %v1711 = vmul.f32 %v1698, %v536
        %v1712 = vmul.f32 %v1704, %v537
        %1714 = vset.pattern.permute.xlu0 0
        %1715 = vperm.xlu0 %1714, %v1646
        %v1716 = vpop.permute.xlu0 %1715
        %1719 = vset.pattern.permute.xlu0 0
        %1720 = vperm.xlu0 %1719, %v1647
        %v1721 = vpop.permute.xlu0 %1720
        %1724 = vset.pattern.permute.xlu0 0
        %1725 = vperm.xlu0 %1724, %v1648
        %v1726 = vpop.permute.xlu0 %1725
        %v1729 = vsel %vm902, %v1643, 0
        %v1732 = vsel %vm902, %v1644, 0
        %v1735 = vsel %vm902, %v1645, 0
        %1737 = vmatprep.subr.mxu0 %v1674
        %1738 = vmatpush1.msra.mxu0 %v1673
        %1739 = vmatprep.subr.mxu0 %v1678
        %1740 = vmatpush1.msra.mxu0 %v1677
        %1741 = vmatprep.subr.mxu0 %v1636
        %1742 = vmatpush1.msra.mxu0 %v1635
        %1743 = vmatprep.subr.mxu0 %v1640
        %1744 = vmatpush1.msra.mxu0 %v1639
        %1745 = vmatprep.subr.mxu0 %v1706
        %1746 = vmatpush1.msra.mxu0 %v1705
        %1747 = vmatprep.subr.mxu0 %v1710
        %1748 = vmatpush1.msra.mxu0 %v1709
        %1749 = vmatprep.subr.mxu0 0.0
        %1750 = vmatpush1.msra.mxu0 0.0
        %1751 = vmatprep.subr.mxu0 0.0
        %1752 = vmatpush1.msra.mxu0 0.0
        %1753 = vmatprep.subr.mxu0 0.0
        %1754 = vmatpush1.msra.mxu0 0.0
        %1755 = vmatprep.subr.mxu0 0.0
        %1756 = vmatpush1.msra.mxu0 0.0
        %1757 = vmatprep.subr.mxu0 0.0
        %1758 = vmatpush1.msra.mxu0 0.0
        %1759 = vmatprep.subr.mxu0 0.0
        %1760 = vmatpush1.msra.mxu0 0.0
        %1761 = vmatprep.subr.mxu0 0.0
        %1762 = vmatpush1.msra.mxu0 0.0
        %1763 = vmatprep.subr.mxu0 0.0
        %1764 = vmatpush1.msra.mxu0 0.0
        %1765 = vmatprep.subr.mxu0 0.0
        %1766 = vmatpush1.msra.mxu0 0.0
        %1767 = vmatprep.subr.mxu0 0.0
        %1768 = vmatpush1.msra.mxu0 0.0
        %1769 = vmatprep.subr.mxu0 0.0
        %1770 = vmatpush1.msra.mxu0 0.0
        %1771 = vmatprep.subr.mxu0 0.0
        %1772 = vmatpush1.msra.mxu0 0.0
        %1773 = vmatprep.subr.mxu0 0.0
        %1774 = vmatpush1.msra.mxu0 0.0
        %1775 = vmatprep.subr.mxu0 0.0
        %1776 = vmatpush1.msra.mxu0 0.0
        %1777 = vmatprep.subr.mxu0 0.0
        %1778 = vmatpush1.msra.mxu0 0.0
        %1779 = vmatprep.subr.mxu0 0.0
        %1780 = vmatpush1.msra.mxu0 0.0
        %1781 = vmatprep.subr.mxu0 0.0
        %1782 = vmatpush1.msra.mxu0 0.0
        %1783 = vmatprep.subr.mxu0 0.0
        %1784 = vmatpush1.msra.mxu0 0.0
        %1785 = vmatprep.subr.mxu0 0.0
        %1786 = vmatpush1.msra.mxu0 0.0
        %1787 = vmatprep.subr.mxu0 0.0
        %1788 = vmatpush1.msra.mxu0 0.0
        %1789 = vmatprep.subr.mxu0 0.0
        %1790 = vmatpush1.msra.mxu0 0.0
        %1791 = vmatprep.subr.mxu0 0.0
        %1792 = vmatpush1.msra.mxu0 0.0
        %1793 = vmatprep.subr.mxu0 0.0
        %1794 = vmatpush1.msra.mxu0 0.0
        %1795 = vmatprep.subr.mxu0 0.0
        %1796 = vmatpush1.msra.mxu0 0.0
        %1797 = vmatprep.subr.mxu0 0.0
        %1798 = vmatpush1.msra.mxu0 0.0
        %1799 = vmatprep.subr.mxu0 0.0
        %1800 = vmatpush1.msra.mxu0 0.0
        %1801 = vmatprep.mubr.f32.mxu0 0.0
        %1802 = vmatmul.mubr.f32.gmra.mrb[0].mxu0 %v1729
        %v1803 = vpop.f32.mrb[0].mxu0
        %v1804 = vadd.f32 %v1716, %v1803
        %v1805 = vpop.f32.mrb[0].mxu0
        %v1806 = vadd.f32 %v1716, %v1805
        %1807 = vmatprep.mubr.f32.mxu0 0.0
        %1808 = vmatmul.mubr.f32.gmra.mrb[0].mxu0 %v1732
        %v1809 = vpop.f32.mrb[0].mxu0
        %v1810 = vadd.f32 %v1721, %v1809
        %v1811 = vpop.f32.mrb[0].mxu0
        %v1812 = vadd.f32 %v1721, %v1811
        %1813 = vmatprep.mubr.f32.mxu0 0.0
        %1814 = vmatmul.mubr.f32.gmra.mrb[0].mxu0 %v1735
        %v1815 = vpop.f32.mrb[0].mxu0
        %v1816 = vadd.f32 %v1726, %v1815
        %v1817 = vpop.f32.mrb[0].mxu0
        %v1818 = vadd.f32 %v1726, %v1817
        %1819 = vdwg.mxu0
        %1820 = vmatprep.subr.mxu0 %v1676
        %1821 = vmatpush1.msra.mxu0 %v1675
        %1822 = vmatprep.subr.mxu0 %v1680
        %1823 = vmatpush1.msra.mxu0 %v1679
        %1824 = vmatprep.subr.mxu0 %v1638
        %1825 = vmatpush1.msra.mxu0 %v1637
        %1826 = vmatprep.subr.mxu0 %v1642
        %1827 = vmatpush1.msra.mxu0 %v1641
        %1828 = vmatprep.subr.mxu0 %v1708
        %1829 = vmatpush1.msra.mxu0 %v1707
        %1830 = vmatprep.subr.mxu0 %v1712
        %1831 = vmatpush1.msra.mxu0 %v1711
        %1832 = vmatprep.subr.mxu0 0.0
        %1833 = vmatpush1.msra.mxu0 0.0
        %1834 = vmatprep.subr.mxu0 0.0
        %1835 = vmatpush1.msra.mxu0 0.0
        %1836 = vmatprep.subr.mxu0 0.0
        %1837 = vmatpush1.msra.mxu0 0.0
        %1838 = vmatprep.subr.mxu0 0.0
        %1839 = vmatpush1.msra.mxu0 0.0
        %1840 = vmatprep.subr.mxu0 0.0
        %1841 = vmatpush1.msra.mxu0 0.0
        %1842 = vmatprep.subr.mxu0 0.0
        %1843 = vmatpush1.msra.mxu0 0.0
        %1844 = vmatprep.subr.mxu0 0.0
        %1845 = vmatpush1.msra.mxu0 0.0
        %1846 = vmatprep.subr.mxu0 0.0
        %1847 = vmatpush1.msra.mxu0 0.0
        %1848 = vmatprep.subr.mxu0 0.0
        %1849 = vmatpush1.msra.mxu0 0.0
        %1850 = vmatprep.subr.mxu0 0.0
        %1851 = vmatpush1.msra.mxu0 0.0
        %1852 = vmatprep.subr.mxu0 0.0
        %1853 = vmatpush1.msra.mxu0 0.0
        %1854 = vmatprep.subr.mxu0 0.0
        %1855 = vmatpush1.msra.mxu0 0.0
        %1856 = vmatprep.subr.mxu0 0.0
        %1857 = vmatpush1.msra.mxu0 0.0
        %1858 = vmatprep.subr.mxu0 0.0
        %1859 = vmatpush1.msra.mxu0 0.0
        %1860 = vmatprep.subr.mxu0 0.0
        %1861 = vmatpush1.msra.mxu0 0.0
        %1862 = vmatprep.subr.mxu0 0.0
        %1863 = vmatpush1.msra.mxu0 0.0
        %1864 = vmatprep.subr.mxu0 0.0
        %1865 = vmatpush1.msra.mxu0 0.0
        %1866 = vmatprep.subr.mxu0 0.0
        %1867 = vmatpush1.msra.mxu0 0.0
        %1868 = vmatprep.subr.mxu0 0.0
        %1869 = vmatpush1.msra.mxu0 0.0
        %1870 = vmatprep.subr.mxu0 0.0
        %1871 = vmatpush1.msra.mxu0 0.0
        %1872 = vmatprep.subr.mxu0 0.0
        %1873 = vmatpush1.msra.mxu0 0.0
        %1874 = vmatprep.subr.mxu0 0.0
        %1875 = vmatpush1.msra.mxu0 0.0
        %1876 = vmatprep.subr.mxu0 0.0
        %1877 = vmatpush1.msra.mxu0 0.0
        %1878 = vmatprep.subr.mxu0 0.0
        %1879 = vmatpush1.msra.mxu0 0.0
        %1880 = vmatprep.subr.mxu0 0.0
        %1881 = vmatpush1.msra.mxu0 0.0
        %1882 = vmatprep.subr.mxu0 0.0
        %1883 = vmatpush1.msra.mxu0 0.0
        %1884 = vmatprep.mubr.f32.mxu0 0.0
        %1885 = vmatmul.mubr.f32.gmra.mrb[0].mxu0 %v1729
        %v1886 = vpop.f32.mrb[0].mxu0
        %v1887 = vadd.f32 %v1716, %v1886
        %v1888 = vpop.f32.mrb[0].mxu0
        %v1889 = vadd.f32 %v1716, %v1888
        %1890 = vmatprep.mubr.f32.mxu0 0.0
        %1891 = vmatmul.mubr.f32.gmra.mrb[0].mxu0 %v1732
        %v1892 = vpop.f32.mrb[0].mxu0
        %v1893 = vadd.f32 %v1721, %v1892
        %v1894 = vpop.f32.mrb[0].mxu0
        %v1895 = vadd.f32 %v1721, %v1894
        %1896 = vmatprep.mubr.f32.mxu0 0.0
        %1897 = vmatmul.mubr.f32.gmra.mrb[0].mxu0 %v1735
        %v1898 = vpop.f32.mrb[0].mxu0
        %v1899 = vadd.f32 %v1726, %v1898
        %v1900 = vpop.f32.mrb[0].mxu0
        %v1901 = vadd.f32 %v1726, %v1900
        %1902 = vdwg.mxu0
        %v1903 = vxor.u32 %v1804, 2147483648
        %v1904 = vxor.u32 %v1806, 2147483648
        %v1905 = vxor.u32 %v1887, 2147483648
        %v1906 = vxor.u32 %v1889, 2147483648
        %v1907 = vxor.u32 %v1810, 2147483648
        %v1908 = vxor.u32 %v1812, 2147483648
        %v1909 = vxor.u32 %v1893, 2147483648
        %v1910 = vxor.u32 %v1895, 2147483648
        %v1911 = vxor.u32 %v1816, 2147483648
        %v1912 = vxor.u32 %v1818, 2147483648
        %v1913 = vxor.u32 %v1899, 2147483648
        %v1914 = vxor.u32 %v1901, 2147483648
        %v1915 = vmul.f32 %v1903, 1.442695
        %v1916 = vpow.pop %v1915
        %v1917 = vmul.f32 %v1904, 1.442695
        %v1918 = vpow.pop %v1917
        %v1919 = vmul.f32 %v1905, 1.442695
        %v1920 = vpow.pop %v1919
        %v1921 = vmul.f32 %v1906, 1.442695
        %v1922 = vpow.pop %v1921
        %v1923 = vmul.f32 %v1907, 1.442695
        %v1924 = vpow.pop %v1923
        %v1925 = vmul.f32 %v1908, 1.442695
        %v1926 = vpow.pop %v1925
        %v1927 = vmul.f32 %v1909, 1.442695
        %v1928 = vpow.pop %v1927
        %v1929 = vmul.f32 %v1910, 1.442695
        %v1930 = vpow.pop %v1929
        %v1931 = vmul.f32 %v1911, 1.442695
        %v1932 = vpow.pop %v1931
        %v1933 = vmul.f32 %v1912, 1.442695
        %v1934 = vpow.pop %v1933
        %v1935 = vmul.f32 %v1913, 1.442695
        %v1936 = vpow.pop %v1935
        %v1937 = vmul.f32 %v1914, 1.442695
        %v1938 = vpow.pop %v1937
        %v1939 = vadd.f32 %v1916, 1.0
        %v1940 = vadd.f32 %v1918, 1.0
        %v1941 = vadd.f32 %v1920, 1.0
        %v1942 = vadd.f32 %v1922, 1.0
        %v1943 = vadd.f32 %v1924, 1.0
        %v1944 = vadd.f32 %v1926, 1.0
        %v1945 = vadd.f32 %v1928, 1.0
        %v1946 = vadd.f32 %v1930, 1.0
        %v1947 = vadd.f32 %v1932, 1.0
        %v1948 = vadd.f32 %v1934, 1.0
        %v1949 = vadd.f32 %v1936, 1.0
        %v1950 = vadd.f32 %v1938, 1.0
        %v1951 = vrcp.pop %v1939
        %v1952 = vmul.f32 1.0, %v1951
        %v1953 = vrcp.pop %v1940
        %v1954 = vmul.f32 1.0, %v1953
        %v1955 = vrcp.pop %v1941
        %v1956 = vmul.f32 1.0, %v1955
        %v1957 = vrcp.pop %v1942
        %v1958 = vmul.f32 1.0, %v1957
        %v1959 = vrcp.pop %v1943
        %v1960 = vmul.f32 1.0, %v1959
        %v1961 = vrcp.pop %v1944
        %v1962 = vmul.f32 1.0, %v1961
        %v1963 = vrcp.pop %v1945
        %v1964 = vmul.f32 1.0, %v1963
        %v1965 = vrcp.pop %v1946
        %v1966 = vmul.f32 1.0, %v1965
        %v1967 = vrcp.pop %v1947
        %v1968 = vmul.f32 1.0, %v1967
        %v1969 = vrcp.pop %v1948
        %v1970 = vmul.f32 1.0, %v1969
        %v1971 = vrcp.pop %v1949
        %v1972 = vmul.f32 1.0, %v1971
        %v1973 = vrcp.pop %v1950
        %v1974 = vmul.f32 1.0, %v1973
        %1975 = vst [vmem:[%s458] sm:$0xff] %v1952
        %1976 = vst [vmem:[%s458 + $0x8] sm:$0xff] %v1954
        %1977 = vst [vmem:[%s458 + $0x10] sm:$0xff] %v1956
        %1978 = vst [vmem:[%s458 + $0x18] sm:$0xff] %v1958
        %1979 = vst [vmem:[%s458 + $0x20] sm:$0xff] %v1960
        %1980 = vst [vmem:[%s458 + $0x28] sm:$0xff] %v1962
        %1981 = vst [vmem:[%s458 + $0x30] sm:$0xff] %v1964
        %1982 = vst [vmem:[%s458 + $0x38] sm:$0xff] %v1966
        %1983 = vst [vmem:[%s458 + $0x40] sm:$0xff] %v1968
        %1984 = vst [vmem:[%s458 + $0x48] sm:$0xff] %v1970
        %1985 = vst [vmem:[%s458 + $0x50] sm:$0xff] %v1972
        %1986 = vst [vmem:[%s458 + $0x58] sm:$0xff] %v1974
        %s1987 = sand.u32 %s316, 1
        %s1988 = scalar_lea.sflag [#allocation4], %s1987
        %s1989 = sand.u32 %s316, 1
        %s1990 = smul.addr %s1989, 96
        %s1991 = scalar_lea.vmem [#allocation5], %s1990
        // Predicated region
        $region77: #{tpu_custom_call.1} parent=71 // pred_check
          %p1992 = pneg %p326
        $region78: #{tpu_custom_call.1} parent=71 // pred_check_branch
          %1994 = sbr.rel (%p1992) target = $region80
        $region79: #{tpu_custom_call.1} parent=71 // pred_region
          %s1995 = smul.u32 4, %s30
          %s1997 = ssub.s32 1536, 1536
          %1998 = vsyncadd %s1988, %s1997
          %s1999 = smul.addr %s1995, 128
          %s2000 = scalar_lea.hbm %s13, %s1999
          %s2001 = sshll.u32 %s1991, 4
          %s2002 = int_to_ptr.vmem [resolvable:$true] %s2001
          %2007 = dma.vmem_to_hbm [thread:$0]  %s2002, 1536, %s2000, %s1988, 512, 1024, 32
        $region80: #{tpu_custom_call.1} parent=71 // pred_fallthru
          _
      $region72: #{tpu_custom_call.1} parent=5 // pred_fallthru
        _
      %p2008 = scmp.le.s32.totalorder 2, %s25
      // Predicated region
      $region81: #{tpu_custom_call.1} parent=5 // pred_check
        %p2009 = pneg %p2008
      $region82: #{tpu_custom_call.1} parent=5 // pred_check_branch
        %2011 = sbr.rel (%p2009) target = $region84
      $region83: #{tpu_custom_call.1} parent=5 // pred_region
        %s2012 = ssub.s32 %s25, 2
        // Predicated region
        $region85: #{tpu_custom_call.1} parent=83 // pred_check
          %p2013 = pneg %p332
        $region86: #{tpu_custom_call.1} parent=83 // pred_check_branch
          %2015 = sbr.rel (%p2013) target = $region88
        $region87: #{tpu_custom_call.1} parent=83 // pred_region
          %s2016 = sand.u32 %s317, 1
          %s2017 = scalar_lea.sflag [#allocation4], %s2016
          %s2018 = sand.u32 %s317, 1
          %s2019 = smul.addr %s2018, 96
          %s2020 = scalar_lea.vmem [#allocation5], %s2019
          %2021 = dma.done %s2017, 1536
        $region88: #{tpu_custom_call.1} parent=83 // pred_fallthru
          _
      $region84: #{tpu_custom_call.1} parent=5 // pred_fallthru
        _
    $region6: #{tpu_custom_call.1} parent=1 // loop_footer
      %s29 = sadd.s32 1, %s25
    $region7: #{tpu_custom_call.1} parent=1 // loop_footer_branch
      %24 = sbr.rel target = $region3
    $region8: #{tpu_custom_call.1} parent=1 // loop_exit
      _
    %2022 = vsyncpa [#allocation3], 1
    %s2023 = scalar_lea.sflag [#allocation3], 1
    %2024 = vsyncpa %s2023, 1
    %2025 = vsyncpa [#allocation4], 1
    %s2026 = scalar_lea.sflag [#allocation4], 1
    %2027 = vsyncpa %s2026, 1

</llo_original>
